<compile_context>
chip_gen: v6e
topology: v6e:2x2x1
jax: 0.10.0
libtpu: 0.0.40
codegen_flags: <defaults>
</compile_context>

<pallas_src>
import functools

import jax
import jax.numpy as jnp
import numpy as np
from jax.experimental import pallas as pl
from jax.experimental.pallas import tpu as pltpu


_LPAD = 128   # left halo (multiple of 128 -> lane-aligned hidden store)
_RPAD = 128   # right halo + slack past the padded pixel dim


# ----------------------------------------------------------------------------
# Fused kernel: both networks in one step via block-diagonal channel packing.
# Layout is channel-major: activations are (C, columns) where the real
# flattened padded pixels N*Hp*Wp live in columns [LPAD, LPAD + m_real) and
# everything else is zero; m_pad = round_up(m_real, 128).
# ----------------------------------------------------------------------------
def _kd_fused_kernel(x_ref, w1_ref, b1_ref, w2_ref, b2_ref, mask_ref,
                     o_ref, h_ref, *, wp, lpad, m_pad):
    # x_ref   : (2Cin,  M_ext)    f32  stacked teacher|student input channels
    # w1_ref  : (2Chm,  9*2Cin)   f32  block-diag conv1 weights, tap-major K
    # b1_ref  : (2Chm,  1)        f32
    # w2_ref  : (2Cout, 9*2Chm)   f32  block-diag conv2 weights, tap-major K
    # b2_ref  : (2Cout, 1)        f32
    # mask_ref: (1, M_pad)        f32  1.0 on interior pixels, 0.0 elsewhere
    # o_ref   : (2Cout, M_pad)    f32  lane-dense output (padded-pixel coords)
    # h_ref   : (2Chm,  M_ext)    f32  VMEM scratch for the halo'd hidden
    ch2 = h_ref.shape[0]
    m_ext = h_ref.shape[1]

    base = lpad - (wp + 1)                                  # static, >= 0
    offs = [base + ky * wp + kx for ky in range(3) for kx in range(3)]

    # ---- conv1: single K = 9*2Cin matmul on the stacked shifted taps -------
    im1 = jnp.concatenate([x_ref[:, o:o + m_pad] for o in offs], axis=0)
    acc1 = jnp.dot(w1_ref[...], im1, preferred_element_type=jnp.float32)

    # bias + ReLU; mask zeroes the pad ring / pad tail so it acts as the zero
    # padding seen by conv2.
    h = jnp.maximum(acc1 + b1_ref[...], 0.0) * mask_ref[...]

    # Halo'd hidden in VMEM scratch: zero ONLY the two halo strips (aligned,
    # 128-lane wide), then one lane-aligned store of the hidden itself.
    h_ref[:, :lpad] = jnp.zeros((ch2, lpad), h_ref.dtype)
    h_ref[:, lpad + m_pad:] = jnp.zeros((ch2, m_ext - lpad - m_pad), h_ref.dtype)
    h_ref[:, lpad:lpad + m_pad] = h

    # ---- conv2: single K = 9*2Chm matmul on the stacked shifted taps -------
    im2 = jnp.concatenate([h_ref[:, o:o + m_pad] for o in offs], axis=0)
    acc2 = jnp.dot(w2_ref[...], im2, preferred_element_type=jnp.float32)

    o_ref[...] = acc2 + b2_ref[...]                         # lane-dense store


def _kd_fused_call(x, w1, b1, w2, b2, mask, *, wp, lpad, m_pad):
    cin2, m_ext = x.shape
    ch2 = w1.shape[0]
    cout2 = w2.shape[0]

    kernel = functools.partial(_kd_fused_kernel, wp=wp, lpad=lpad, m_pad=m_pad)
    return pl.pallas_call(
        kernel,
        out_shape=jax.ShapeDtypeStruct((cout2, m_pad), jnp.float32),
        grid_spec=pltpu.PrefetchScalarGridSpec(
            num_scalar_prefetch=0,
            grid=(1,),                                     # single fused step
            in_specs=[
                pl.BlockSpec((cin2, m_ext), lambda i: (0, 0)),
                pl.BlockSpec((ch2, 9 * cin2), lambda i: (0, 0)),
                pl.BlockSpec((ch2, 1), lambda i: (0, 0)),
                pl.BlockSpec((cout2, 9 * ch2), lambda i: (0, 0)),
                pl.BlockSpec((cout2, 1), lambda i: (0, 0)),
                pl.BlockSpec((1, m_pad), lambda i: (0, 0)),
            ],
            out_specs=pl.BlockSpec((cout2, m_pad), lambda i: (0, 0)),
            scratch_shapes=[pltpu.VMEM((ch2, m_ext), jnp.float32)],
        ),
        compiler_params=pltpu.CompilerParams(
            dimension_semantics=("arbitrary",),
            vmem_limit_bytes=16 * 1024 * 1024,   # working set << 1 MiB
        ),
    )(x, w1, b1, w2, b2, mask)


# ----------------------------------------------------------------------------
# Parameter init (PyTorch Conv2d-style uniform) + one-time block-diag packing.
# ----------------------------------------------------------------------------
def _init_cnn_params(key, c_in, c_hidden, c_out):
    k1, k2, k3, k4 = jax.random.split(key, 4)
    s1 = 1.0 / float(np.sqrt(c_in * 9.0))
    s2 = 1.0 / float(np.sqrt(c_hidden * 9.0))
    return {
        "w1": jax.random.uniform(k1, (c_hidden, c_in, 3, 3), jnp.float32, -s1, s1),
        "b1": jax.random.uniform(k2, (c_hidden,), jnp.float32, -s1, s1),
        "w2": jax.random.uniform(k3, (c_out, c_hidden, 3, 3), jnp.float32, -s2, s2),
        "b2": jax.random.uniform(k4, (c_out,), jnp.float32, -s2, s2),
    }


def _tap_major(w):
    """(Co, Ci, 3, 3) -> (9, Co, Ci), tap index t = 3*ky + kx."""
    w = np.asarray(w)
    return np.transpose(w, (2, 3, 0, 1)).reshape(9, w.shape[0], w.shape[1])


def _pack_block_diag(w_tea, w_stu, rows_per, cols_per):
    """Block-diagonal (teacher top-left, student bottom-right, zero-padded)
    weights, concatenated tap-major along K: result (2*rows_per, 9*2*cols_per)."""
    blk = np.zeros((9, 2 * rows_per, 2 * cols_per), np.float32)
    wt, ws = _tap_major(w_tea), _tap_major(w_stu)
    blk[:, :wt.shape[1], :wt.shape[2]] = wt
    blk[:, rows_per:rows_per + ws.shape[1], cols_per:cols_per + ws.shape[2]] = ws
    packed = np.transpose(blk, (1, 0, 2)).reshape(2 * rows_per, 9 * 2 * cols_per)
    return jnp.asarray(packed, jnp.float32)


def _pack_bias(b_tea, b_stu, rows_per):
    b = np.zeros((2 * rows_per, 1), np.float32)
    b[:np.asarray(b_tea).shape[0], 0] = np.asarray(b_tea)
    b[rows_per:rows_per + np.asarray(b_stu).shape[0], 0] = np.asarray(b_stu)
    return jnp.asarray(b)


def init_kdnet(key, c_in, c_out, tea_hidden=8, stu_hidden=4):
    k_tea, k_stu = jax.random.split(key)
    tea = _init_cnn_params(k_tea, c_in, tea_hidden, c_out)
    stu = _init_cnn_params(k_stu, c_in, stu_hidden, c_out)
    chm = max(tea_hidden, stu_hidden)            # per-network hidden slots
    packed = {
        "w1": _pack_block_diag(tea["w1"], stu["w1"], chm, c_in),     # (2Chm, 9*2Cin)
        "b1": _pack_bias(tea["b1"], stu["b1"], chm),                 # (2Chm, 1)
        "w2": _pack_block_diag(tea["w2"], stu["w2"], c_out, chm),    # (2Cout, 9*2Chm)
        "b2": _pack_bias(tea["b2"], stu["b2"], c_out),               # (2Cout, 1)
    }
    return packed, tea, stu


# ----------------------------------------------------------------------------
# JAX-side glue: minimal layout work (concat + pad + transpose/flatten + pad).
# ----------------------------------------------------------------------------
def _round_up(x, m):
    return ((x + m - 1) // m) * m


def _interior_mask(n, hp, wp, m_pad):
    """Trace-time numpy constant: 1.0 on interior pixels, 0.0 on pad ring/tail."""
    m = np.zeros((hp, wp), np.float32)
    m[1:hp - 1, 1:wp - 1] = 1.0
    flat = np.tile(m.reshape(-1), n)
    out = np.zeros((1, m_pad), np.float32)
    out[0, :flat.size] = flat
    return jnp.asarray(out)


@jax.jit
def _kdnet_forward_impl(packed, x_tea, x_stu):
    n, c, h, w = x_stu.shape
    hp, wp = h + 2, w + 2
    assert wp + 1 <= _LPAD, "image width too large for the fixed 128-lane halo"
    m_real = n * hp * wp
    m_pad = _round_up(m_real, 128)
    m_ext = _LPAD + m_pad + _RPAD

    # Pack teacher|student channels, pad spatially, flatten channel-major,
    # place the real pixels at column LPAD.
    x2 = jnp.concatenate([x_tea, x_stu], axis=1)                  # (N, 2C, H, W)
    x2 = jnp.pad(x2, ((0, 0), (0, 0), (1, 1), (1, 1)))            # (N, 2C, Hp, Wp)
    xf = jnp.transpose(x2, (1, 0, 2, 3)).reshape(2 * c, m_real)   # (2C, M_real)
    xf = jnp.pad(xf, ((0, 0), (_LPAD, m_ext - _LPAD - m_real)))
    xf = xf.astype(jnp.float32)

    mask = _interior_mask(n, hp, wp, m_pad)                       # compile-time const

    out = _kd_fused_call(xf, packed["w1"], packed["b1"],
                         packed["w2"], packed["b2"], mask,
                         wp=wp, lpad=_LPAD, m_pad=m_pad)          # (2Cout, M_pad)

    cout = out.shape[0] // 2
    # Module contract returns NCHW tensors, so one slice+reshape+transpose stays.
    out = out[:, :m_real].reshape(2, cout, n, hp, wp)[:, :, :, 1:h + 1, 1:w + 1]
    out = jnp.transpose(out, (0, 2, 1, 3, 4))                     # (2, N, Cout, H, W)
    return out[0], out[1]


def kdnet_forward(packed_params, input_stu, input_tea=None):
    """KDNet forward: (teacher_output, student_output); teacher is no-grad."""
    x_tea = input_stu if input_tea is None else input_tea
    out_tea, out_stu = _kdnet_forward_impl(packed_params, x_tea, input_stu)
    # torch.no_grad() on the teacher branch -> stop_gradient in JAX.
    return jax.lax.stop_gradient(out_tea), out_stu


# ----------------------------------------------------------------------------
# Plain-JAX f32 reference (structural correctness check).
# ----------------------------------------------------------------------------
def _conv3x3_ref(x, w, b):
    n, c, h, wd = x.shape
    xp = jnp.pad(x, ((0, 0), (0, 0), (1, 1), (1, 1)))
    out = jnp.zeros((n, w.shape[0], h, wd), jnp.float32)
    for ky in range(3):
        for kx in range(3):
            out = out + jnp.einsum("nchw,oc->nohw",
                                   xp[:, :, ky:ky + h, kx:kx + wd],
                                   w[:, :, ky, kx])
    return out + b[None, :, None, None]


def _cnn_ref(params, x):
    hidden = jnp.maximum(_conv3x3_ref(x, params["w1"], params["b1"]), 0.0)
    return _conv3x3_ref(hidden, params["w2"], params["b2"])


if __name__ == "__main__":
    key = jax.random.PRNGKey(0)
    k_params, k_xs, k_xt = jax.random.split(key, 3)

    N, C, H, W = 2, 4, 16, 16
    packed, tea_raw, stu_raw = init_kdnet(k_params, c_in=C, c_out=C,
                                          tea_hidden=8, stu_hidden=4)

    input_stu = jax.random.normal(k_xs, (N, C, H, W), jnp.float32)
    input_tea = jax.random.normal(k_xt, (N, C, H, W), jnp.float32)

    # Path 1: distinct teacher input.
    out_tea, out_stu = kdnet_forward(packed, input_stu, input_tea)
    # Path 2: teacher falls back to the student input (input_tea=None).
    out_tea2, out_stu2 = kdnet_forward(packed, input_stu, None)
    jax.block_until_ready((out_tea, out_stu, out_tea2, out_stu2))

    assert out_tea.shape == (N, C, H, W) and out_stu.shape == (N, C, H, W)
    assert out_tea2.shape == (N, C, H, W) and out_stu2.shape == (N, C, H, W)

    # Numerical sanity vs a plain-JAX f32 reference (loose tolerance to stay
    # robust to MXU rounding; still catches any indexing/layout/packing bug).
    ref_tea = _cnn_ref(tea_raw, input_tea)
    ref_stu = _cnn_ref(stu_raw, input_stu)
    ref_tea2 = _cnn_ref(tea_raw, input_stu)
    np.testing.assert_allclose(np.asarray(out_tea), np.asarray(ref_tea),
                               atol=1e-2, rtol=1e-2)
    np.testing.assert_allclose(np.asarray(out_stu), np.asarray(ref_stu),
                               atol=1e-2, rtol=1e-2)
    np.testing.assert_allclose(np.asarray(out_tea2), np.asarray(ref_tea2),
                               atol=1e-2, rtol=1e-2)

    print("KERNEL_OK")
</pallas_src>

<mosaic_0001>
module attributes {stable_mosaic.version = 11 : i64} {
  func.func @_kd_fused_kernel(%arg0: i32, %arg1: memref<8x1024xf32, #tpu.memory_space<vmem>>, %arg2: memref<16x72xf32, #tpu.memory_space<vmem>>, %arg3: memref<16x1xf32, #tpu.memory_space<vmem>>, %arg4: memref<8x144xf32, #tpu.memory_space<vmem>>, %arg5: memref<8x1xf32, #tpu.memory_space<vmem>>, %arg6: memref<1x768xf32, #tpu.memory_space<vmem>>, %arg7: memref<8x768xf32, #tpu.memory_space<vmem>>, %arg8: memref<16x1024xf32, #tpu.memory_space<vmem>>) attributes {dimension_semantics = [#tpu.dimension_semantics<arbitrary>], iteration_bounds = array<i64: 1>, scalar_prefetch = 0 : i64, scratch_operands = 1 : i64, tpu.core_type = #tpu.core_type<tc>, window_params = [{pipeline_mode = #tpu.pipeline_mode<synchronous>, transform_indices = @transform_0, window_bounds = array<i64: 8, 1024>}, {pipeline_mode = #tpu.pipeline_mode<synchronous>, transform_indices = @transform_1, window_bounds = array<i64: 16, 72>}, {pipeline_mode = #tpu.pipeline_mode<synchronous>, transform_indices = @transform_2, window_bounds = array<i64: 16, 1>}, {pipeline_mode = #tpu.pipeline_mode<synchronous>, transform_indices = @transform_3, window_bounds = array<i64: 8, 144>}, {pipeline_mode = #tpu.pipeline_mode<synchronous>, transform_indices = @transform_4, window_bounds = array<i64: 8, 1>}, {pipeline_mode = #tpu.pipeline_mode<synchronous>, transform_indices = @transform_5, window_bounds = array<i64: 1, 768>}, {pipeline_mode = #tpu.pipeline_mode<synchronous>, transform_indices = @transform_6, window_bounds = array<i64: 8, 768>}]} {
    %c0 = arith.constant 0 : index
    %c109 = arith.constant 109 : index
    %0 = vector.load %arg1[%c0, %c109] : memref<8x1024xf32, #tpu.memory_space<vmem>>, vector<8x768xf32>
    %c0_0 = arith.constant 0 : index
    %c110 = arith.constant 110 : index
    %1 = vector.load %arg1[%c0_0, %c110] : memref<8x1024xf32, #tpu.memory_space<vmem>>, vector<8x768xf32>
    %c0_1 = arith.constant 0 : index
    %c111 = arith.constant 111 : index
    %2 = vector.load %arg1[%c0_1, %c111] : memref<8x1024xf32, #tpu.memory_space<vmem>>, vector<8x768xf32>
    %c0_2 = arith.constant 0 : index
    %c127 = arith.constant 127 : index
    %3 = vector.load %arg1[%c0_2, %c127] : memref<8x1024xf32, #tpu.memory_space<vmem>>, vector<8x768xf32>
    %c0_3 = arith.constant 0 : index
    %c128 = arith.constant 128 : index
    %4 = vector.load %arg1[%c0_3, %c128] : memref<8x1024xf32, #tpu.memory_space<vmem>>, vector<8x768xf32>
    %c0_4 = arith.constant 0 : index
    %c129 = arith.constant 129 : index
    %5 = vector.load %arg1[%c0_4, %c129] : memref<8x1024xf32, #tpu.memory_space<vmem>>, vector<8x768xf32>
    %c0_5 = arith.constant 0 : index
    %c145 = arith.constant 145 : index
    %6 = vector.load %arg1[%c0_5, %c145] : memref<8x1024xf32, #tpu.memory_space<vmem>>, vector<8x768xf32>
    %c0_6 = arith.constant 0 : index
    %c146 = arith.constant 146 : index
    %7 = vector.load %arg1[%c0_6, %c146] : memref<8x1024xf32, #tpu.memory_space<vmem>>, vector<8x768xf32>
    %c0_7 = arith.constant 0 : index
    %c147 = arith.constant 147 : index
    %8 = vector.load %arg1[%c0_7, %c147] : memref<8x1024xf32, #tpu.memory_space<vmem>>, vector<8x768xf32>
    %9 = tpu.concatenate %0, %1, %2, %3, %4, %5, %6, %7, %8 in 0 : vector<8x768xf32>, vector<8x768xf32>, vector<8x768xf32>, vector<8x768xf32>, vector<8x768xf32>, vector<8x768xf32>, vector<8x768xf32>, vector<8x768xf32>, vector<8x768xf32> -> vector<72x768xf32>
    %c0_8 = arith.constant 0 : index
    %c0_9 = arith.constant 0 : index
    %10 = vector.load %arg2[%c0_8, %c0_9] : memref<16x72xf32, #tpu.memory_space<vmem>>, vector<16x72xf32>
    %cst = arith.constant dense<0.000000e+00> : vector<16x768xf32>
    %11 = tpu.matmul %10, %9, %cst {dimension_numbers = #tpu.dot_dimension_numbers<[1], [0], [0], [1], [0, 0, 1, 1], [], []>} : vector<16x72xf32>, vector<72x768xf32>, vector<16x768xf32> -> vector<16x768xf32>
    %c0_10 = arith.constant 0 : index
    %c0_11 = arith.constant 0 : index
    %12 = vector.load %arg3[%c0_10, %c0_11] : memref<16x1xf32, #tpu.memory_space<vmem>>, vector<16x1xf32>
    %13 = vector.broadcast %12 : vector<16x1xf32> to vector<16x768xf32>
    %14 = arith.addf %11, %13 : vector<16x768xf32>
    %cst_12 = arith.constant 0.000000e+00 : f32
    %15 = vector.broadcast %cst_12 : f32 to vector<16x768xf32>
    %16 = arith.maximumf %14, %15 : vector<16x768xf32>
    %c0_13 = arith.constant 0 : index
    %c0_14 = arith.constant 0 : index
    %17 = vector.load %arg6[%c0_13, %c0_14] : memref<1x768xf32, #tpu.memory_space<vmem>>, vector<1x768xf32>
    %18 = vector.broadcast %17 : vector<1x768xf32> to vector<16x768xf32>
    %19 = arith.mulf %16, %18 : vector<16x768xf32>
    %cst_15 = arith.constant 0.000000e+00 : f32
    %20 = vector.broadcast %cst_15 : f32 to vector<16x128xf32>
    %c0_16 = arith.constant 0 : index
    %c0_17 = arith.constant 0 : index
    %21 = vector.load %arg8[%c0_16, %c0_17] : memref<16x1024xf32, #tpu.memory_space<vmem>>, vector<16x128xf32>
    tpu.vector_store %arg8[%c0_16, %c0_17], %20 {strides = array<i32>} : memref<16x1024xf32, #tpu.memory_space<vmem>>, vector<16x128xf32>,
    %cst_18 = arith.constant 0.000000e+00 : f32
    %22 = vector.broadcast %cst_18 : f32 to vector<16x128xf32>
    %c0_19 = arith.constant 0 : index
    %c896 = arith.constant 896 : index
    %23 = vector.load %arg8[%c0_19, %c896] : memref<16x1024xf32, #tpu.memory_space<vmem>>, vector<16x128xf32>
    tpu.vector_store %arg8[%c0_19, %c896], %22 {strides = array<i32>} : memref<16x1024xf32, #tpu.memory_space<vmem>>, vector<16x128xf32>,
    %c0_20 = arith.constant 0 : index
    %c128_21 = arith.constant 128 : index
    %24 = vector.load %arg8[%c0_20, %c128_21] : memref<16x1024xf32, #tpu.memory_space<vmem>>, vector<16x768xf32>
    tpu.vector_store %arg8[%c0_20, %c128_21], %19 {strides = array<i32>} : memref<16x1024xf32, #tpu.memory_space<vmem>>, vector<16x768xf32>,
    %c0_22 = arith.constant 0 : index
    %c109_23 = arith.constant 109 : index
    %25 = vector.load %arg8[%c0_22, %c109_23] : memref<16x1024xf32, #tpu.memory_space<vmem>>, vector<16x768xf32>
    %c0_24 = arith.constant 0 : index
    %c110_25 = arith.constant 110 : index
    %26 = vector.load %arg8[%c0_24, %c110_25] : memref<16x1024xf32, #tpu.memory_space<vmem>>, vector<16x768xf32>
    %c0_26 = arith.constant 0 : index
    %c111_27 = arith.constant 111 : index
    %27 = vector.load %arg8[%c0_26, %c111_27] : memref<16x1024xf32, #tpu.memory_space<vmem>>, vector<16x768xf32>
    %c0_28 = arith.constant 0 : index
    %c127_29 = arith.constant 127 : index
    %28 = vector.load %arg8[%c0_28, %c127_29] : memref<16x1024xf32, #tpu.memory_space<vmem>>, vector<16x768xf32>
    %c0_30 = arith.constant 0 : index
    %c128_31 = arith.constant 128 : index
    %29 = vector.load %arg8[%c0_30, %c128_31] : memref<16x1024xf32, #tpu.memory_space<vmem>>, vector<16x768xf32>
    %c0_32 = arith.constant 0 : index
    %c129_33 = arith.constant 129 : index
    %30 = vector.load %arg8[%c0_32, %c129_33] : memref<16x1024xf32, #tpu.memory_space<vmem>>, vector<16x768xf32>
    %c0_34 = arith.constant 0 : index
    %c145_35 = arith.constant 145 : index
    %31 = vector.load %arg8[%c0_34, %c145_35] : memref<16x1024xf32, #tpu.memory_space<vmem>>, vector<16x768xf32>
    %c0_36 = arith.constant 0 : index
    %c146_37 = arith.constant 146 : index
    %32 = vector.load %arg8[%c0_36, %c146_37] : memref<16x1024xf32, #tpu.memory_space<vmem>>, vector<16x768xf32>
    %c0_38 = arith.constant 0 : index
    %c147_39 = arith.constant 147 : index
    %33 = vector.load %arg8[%c0_38, %c147_39] : memref<16x1024xf32, #tpu.memory_space<vmem>>, vector<16x768xf32>
    %34 = tpu.concatenate %25, %26, %27, %28, %29, %30, %31, %32, %33 in 0 : vector<16x768xf32>, vector<16x768xf32>, vector<16x768xf32>, vector<16x768xf32>, vector<16x768xf32>, vector<16x768xf32>, vector<16x768xf32>, vector<16x768xf32>, vector<16x768xf32> -> vector<144x768xf32>
    %c0_40 = arith.constant 0 : index
    %c0_41 = arith.constant 0 : index
    %35 = vector.load %arg4[%c0_40, %c0_41] : memref<8x144xf32, #tpu.memory_space<vmem>>, vector<8x144xf32>
    %cst_42 = arith.constant dense<0.000000e+00> : vector<8x768xf32>
    %36 = tpu.matmul %35, %34, %cst_42 {dimension_numbers = #tpu.dot_dimension_numbers<[1], [0], [0], [1], [0, 0, 1, 1], [], []>} : vector<8x144xf32>, vector<144x768xf32>, vector<8x768xf32> -> vector<8x768xf32>
    %c0_43 = arith.constant 0 : index
    %c0_44 = arith.constant 0 : index
    %37 = vector.load %arg5[%c0_43, %c0_44] : memref<8x1xf32, #tpu.memory_space<vmem>>, vector<8x1xf32>
    %38 = vector.broadcast %37 : vector<8x1xf32> to vector<8x768xf32>
    %39 = arith.addf %36, %38 : vector<8x768xf32>
    %c0_45 = arith.constant 0 : index
    %c0_46 = arith.constant 0 : index
    %40 = vector.load %arg7[%c0_45, %c0_46] : memref<8x768xf32, #tpu.memory_space<vmem>>, vector<8x768xf32>
    tpu.vector_store %arg7[%c0_45, %c0_46], %39 {strides = array<i32>} : memref<8x768xf32, #tpu.memory_space<vmem>>, vector<8x768xf32>,
    return
  }
  func.func @transform_0(%arg0: i32) -> (i32, i32) {
    %c0_i32 = arith.constant 0 : i32
    %c0_i32_0 = arith.constant 0 : i32
    %c0_i32_1 = arith.constant 0 : i32
    return %c0_i32, %c0_i32_0 : i32, i32
  }
  func.func @transform_1(%arg0: i32) -> (i32, i32) {
    %c0_i32 = arith.constant 0 : i32
    %c0_i32_0 = arith.constant 0 : i32
    %c0_i32_1 = arith.constant 0 : i32
    return %c0_i32, %c0_i32_0 : i32, i32
  }
  func.func @transform_2(%arg0: i32) -> (i32, i32) {
    %c0_i32 = arith.constant 0 : i32
    %c0_i32_0 = arith.constant 0 : i32
    %c0_i32_1 = arith.constant 0 : i32
    return %c0_i32, %c0_i32_0 : i32, i32
  }
  func.func @transform_3(%arg0: i32) -> (i32, i32) {
    %c0_i32 = arith.constant 0 : i32
    %c0_i32_0 = arith.constant 0 : i32
    %c0_i32_1 = arith.constant 0 : i32
    return %c0_i32, %c0_i32_0 : i32, i32
  }
  func.func @transform_4(%arg0: i32) -> (i32, i32) {
    %c0_i32 = arith.constant 0 : i32
    %c0_i32_0 = arith.constant 0 : i32
    %c0_i32_1 = arith.constant 0 : i32
    return %c0_i32, %c0_i32_0 : i32, i32
  }
  func.func @transform_5(%arg0: i32) -> (i32, i32) {
    %c0_i32 = arith.constant 0 : i32
    %c0_i32_0 = arith.constant 0 : i32
    %c0_i32_1 = arith.constant 0 : i32
    return %c0_i32, %c0_i32_0 : i32, i32
  }
  func.func @transform_6(%arg0: i32) -> (i32, i32) {
    %c0_i32 = arith.constant 0 : i32
    %c0_i32_0 = arith.constant 0 : i32
    %c0_i32_1 = arith.constant 0 : i32
    return %c0_i32, %c0_i32_0 : i32, i32
  }
}

</mosaic_0001>

<llo_original>
// kernel: _kdnet_forward_impl.1
$region0: #{_kdnet_forward_impl.1}
  #allocation0 [shape = 'u32[]', space=smem, size = 0x4, offset = 0x4, fixed_abs, tag = 'smem constant byte address 0x4 - core index']
  #allocation1 [shape = 'u32[144,128]{1,0:T(1,128)}', space=vmem, size = 0x12000, scoped, tag = 'internal scratch']
  #allocation2 [shape = 'f32[16,1024]{1,0:T(8,128)}', space=vmem, size = 0x10000, scoped, tag = 'scratch operand']
  %s0 = inlined_call_operand.vmem [shape: f32[8,1024], index: 0, kind: input, shape index: {}]
  %s1 = inlined_call_operand.vmem [shape: f32[16,72], index: 1, kind: input, shape index: {}]
  %s2 = inlined_call_operand.vmem [shape: f32[16,1], index: 2, kind: input, shape index: {}]
  %s3 = inlined_call_operand.vmem [shape: f32[8,144], index: 3, kind: input, shape index: {}]
  %s4 = inlined_call_operand.vmem [shape: f32[8,1], index: 4, kind: input, shape index: {}]
  %s5 = inlined_call_operand.vmem [shape: f32[1,768], index: 5, kind: input, shape index: {}]
  %s6 = inlined_call_operand.vmem [shape: f32[8,768], index: 6, kind: output, shape index: {}]
  %s7 = sld [smem:[#allocation0]]
  $region34: #{_kdnet_forward_impl.1} parent=0
    _
  %s9 = ssub.s32 1, %s7
  %s10 = scalar_select 0, %s9, %s7
  // Predicated region
  $region2: #{_kdnet_forward_impl.1} parent=0 // pred_check
    _
  $region3: #{_kdnet_forward_impl.1} parent=0 // pred_check_branch
    %12 = sbr.rel (0) target = $region5
  $region4: #{_kdnet_forward_impl.1} parent=0 // pred_region
    _
  $region5: #{_kdnet_forward_impl.1} parent=0 // pred_fallthru
    _
  // Predicated region
  $region6: #{_kdnet_forward_impl.1} parent=0 // pred_check
    _
  $region7: #{_kdnet_forward_impl.1} parent=0 // pred_check_branch
    %14 = sbr.rel (0) target = $region9
  $region8: #{_kdnet_forward_impl.1} parent=0 // pred_region
    _
  $region9: #{_kdnet_forward_impl.1} parent=0 // pred_fallthru
    _
  // Predicated region
  $region10: #{_kdnet_forward_impl.1} parent=0 // pred_check
    _
  $region11: #{_kdnet_forward_impl.1} parent=0 // pred_check_branch
    %16 = sbr.rel (0) target = $region13
  $region12: #{_kdnet_forward_impl.1} parent=0 // pred_region
    _
  $region13: #{_kdnet_forward_impl.1} parent=0 // pred_fallthru
    _
  // Predicated region
  $region14: #{_kdnet_forward_impl.1} parent=0 // pred_check
    _
  $region15: #{_kdnet_forward_impl.1} parent=0 // pred_check_branch
    %18 = sbr.rel (0) target = $region17
  $region16: #{_kdnet_forward_impl.1} parent=0 // pred_region
    _
  $region17: #{_kdnet_forward_impl.1} parent=0 // pred_fallthru
    _
  // Predicated region
  $region18: #{_kdnet_forward_impl.1} parent=0 // pred_check
    _
  $region19: #{_kdnet_forward_impl.1} parent=0 // pred_check_branch
    %20 = sbr.rel (0) target = $region21
  $region20: #{_kdnet_forward_impl.1} parent=0 // pred_region
    _
  $region21: #{_kdnet_forward_impl.1} parent=0 // pred_fallthru
    _
  // Predicated region
  $region22: #{_kdnet_forward_impl.1} parent=0 // pred_check
    _
  $region23: #{_kdnet_forward_impl.1} parent=0 // pred_check_branch
    %22 = sbr.rel (0) target = $region25
  $region24: #{_kdnet_forward_impl.1} parent=0 // pred_region
    _
  $region25: #{_kdnet_forward_impl.1} parent=0 // pred_fallthru
    _
  %v23 = vld [vmem:[%s0] sm:$0xff]
  %v24 = vld [vmem:[%s0 + $0x8] sm:$0xff]
  %v25 = vld [vmem:[%s0 + $0x10] sm:$0xff]
  %v26 = vld [vmem:[%s0 + $0x18] sm:$0xff]
  %v27 = vld [vmem:[%s0 + $0x20] sm:$0xff]
  %v28 = vld [vmem:[%s0 + $0x28] sm:$0xff]
  %v29 = vld [vmem:[%s0 + $0x30] sm:$0xff]
  %v30 = vld [vmem:[%s0 + $0x8] sm:$0xff]
  %v31 = vld [vmem:[%s0 + $0x10] sm:$0xff]
  %v32 = vld [vmem:[%s0 + $0x18] sm:$0xff]
  %v33 = vld [vmem:[%s0 + $0x20] sm:$0xff]
  %v34 = vld [vmem:[%s0 + $0x28] sm:$0xff]
  %v35 = vld [vmem:[%s0 + $0x30] sm:$0xff]
  %v36 = vld [vmem:[%s0 + $0x38] sm:$0xff]
  %44 = vrot.lane.b32.xlu0 %v23, 127
  %v45 = vpop.permute.xlu0 %44
  %46 = vrot.lane.b32.xlu0 %v24, 127
  %v47 = vpop.permute.xlu0 %46
  %48 = vrot.lane.b32.xlu0 %v25, 127
  %v49 = vpop.permute.xlu0 %48
  %50 = vrot.lane.b32.xlu0 %v26, 127
  %v51 = vpop.permute.xlu0 %50
  %52 = vrot.lane.b32.xlu0 %v27, 127
  %v53 = vpop.permute.xlu0 %52
  %54 = vrot.lane.b32.xlu0 %v28, 127
  %v55 = vpop.permute.xlu0 %54
  %56 = vrot.lane.b32.xlu0 %v29, 127
  %v57 = vpop.permute.xlu0 %56
  %vm58 = vcmask 1039360
  %v59 = vsel %vm58, %v45, %v47
  %v60 = vsel %vm58, %v47, %v49
  %v61 = vsel %vm58, %v49, %v51
  %v62 = vsel %vm58, %v51, %v53
  %v63 = vsel %vm58, %v53, %v55
  %v64 = vsel %vm58, %v55, %v57
  %65 = vrot.lane.b32.xlu0 %v23, 126
  %v66 = vpop.permute.xlu0 %65
  %67 = vrot.lane.b32.xlu0 %v24, 126
  %v68 = vpop.permute.xlu0 %67
  %69 = vrot.lane.b32.xlu0 %v25, 126
  %v70 = vpop.permute.xlu0 %69
  %71 = vrot.lane.b32.xlu0 %v26, 126
  %v72 = vpop.permute.xlu0 %71
  %73 = vrot.lane.b32.xlu0 %v27, 126
  %v74 = vpop.permute.xlu0 %73
  %75 = vrot.lane.b32.xlu0 %v28, 126
  %v76 = vpop.permute.xlu0 %75
  %77 = vrot.lane.b32.xlu0 %v29, 126
  %v78 = vpop.permute.xlu0 %77
  %vm79 = vcmask 1031168
  %v80 = vsel %vm79, %v66, %v68
  %v81 = vsel %vm79, %v68, %v70
  %v82 = vsel %vm79, %v70, %v72
  %v83 = vsel %vm79, %v72, %v74
  %v84 = vsel %vm79, %v74, %v76
  %v85 = vsel %vm79, %v76, %v78
  %86 = vrot.lane.b32.xlu0 %v23, 110
  %v87 = vpop.permute.xlu0 %86
  %88 = vrot.lane.b32.xlu0 %v24, 110
  %v89 = vpop.permute.xlu0 %88
  %90 = vrot.lane.b32.xlu0 %v25, 110
  %v91 = vpop.permute.xlu0 %90
  %92 = vrot.lane.b32.xlu0 %v26, 110
  %v93 = vpop.permute.xlu0 %92
  %94 = vrot.lane.b32.xlu0 %v27, 110
  %v95 = vpop.permute.xlu0 %94
  %96 = vrot.lane.b32.xlu0 %v28, 110
  %v97 = vpop.permute.xlu0 %96
  %98 = vrot.lane.b32.xlu0 %v29, 110
  %v99 = vpop.permute.xlu0 %98
  %vm100 = vcmask 900096
  %v101 = vsel %vm100, %v87, %v89
  %v102 = vsel %vm100, %v89, %v91
  %v103 = vsel %vm100, %v91, %v93
  %v104 = vsel %vm100, %v93, %v95
  %v105 = vsel %vm100, %v95, %v97
  %v106 = vsel %vm100, %v97, %v99
  %107 = vrot.lane.b32.xlu0 %v24, 109
  %v108 = vpop.permute.xlu0 %107
  %109 = vrot.lane.b32.xlu0 %v25, 109
  %v110 = vpop.permute.xlu0 %109
  %111 = vrot.lane.b32.xlu0 %v26, 109
  %v112 = vpop.permute.xlu0 %111
  %113 = vrot.lane.b32.xlu0 %v27, 109
  %v114 = vpop.permute.xlu0 %113
  %115 = vrot.lane.b32.xlu0 %v28, 109
  %v116 = vpop.permute.xlu0 %115
  %117 = vrot.lane.b32.xlu0 %v29, 109
  %v118 = vpop.permute.xlu0 %117
  %vm119 = vcmask 891904
  %v120 = vsel %vm119, %v108, %v110
  %v121 = vsel %vm119, %v110, %v112
  %v122 = vsel %vm119, %v112, %v114
  %v123 = vsel %vm119, %v114, %v116
  %v124 = vsel %vm119, %v116, %v118
  %132 = vrot.lane.b32.xlu0 %v30, 108
  %v133 = vpop.permute.xlu0 %132
  %134 = vrot.lane.b32.xlu0 %v31, 108
  %v135 = vpop.permute.xlu0 %134
  %136 = vrot.lane.b32.xlu0 %v32, 108
  %v137 = vpop.permute.xlu0 %136
  %138 = vrot.lane.b32.xlu0 %v33, 108
  %v139 = vpop.permute.xlu0 %138
  %140 = vrot.lane.b32.xlu0 %v34, 108
  %v141 = vpop.permute.xlu0 %140
  %142 = vrot.lane.b32.xlu0 %v35, 108
  %v143 = vpop.permute.xlu0 %142
  %144 = vrot.lane.b32.xlu0 %v36, 108
  %v145 = vpop.permute.xlu0 %144
  %vm146 = vcmask 883712
  %v147 = vsel %vm146, %v133, %v135
  %v148 = vsel %vm146, %v135, %v137
  %v149 = vsel %vm146, %v137, %v139
  %v150 = vsel %vm146, %v139, %v141
  %v151 = vsel %vm146, %v141, %v143
  %v152 = vsel %vm146, %v143, %v145
  %153 = vrot.lane.b32.xlu0 %v30, 92
  %v154 = vpop.permute.xlu0 %153
  %155 = vrot.lane.b32.xlu0 %v31, 92
  %v156 = vpop.permute.xlu0 %155
  %157 = vrot.lane.b32.xlu0 %v32, 92
  %v158 = vpop.permute.xlu0 %157
  %159 = vrot.lane.b32.xlu0 %v33, 92
  %v160 = vpop.permute.xlu0 %159
  %161 = vrot.lane.b32.xlu0 %v34, 92
  %v162 = vpop.permute.xlu0 %161
  %163 = vrot.lane.b32.xlu0 %v35, 92
  %v164 = vpop.permute.xlu0 %163
  %165 = vrot.lane.b32.xlu0 %v36, 92
  %v166 = vpop.permute.xlu0 %165
  %vm167 = vcmask 752640
  %v168 = vsel %vm167, %v154, %v156
  %v169 = vsel %vm167, %v156, %v158
  %v170 = vsel %vm167, %v158, %v160
  %v171 = vsel %vm167, %v160, %v162
  %v172 = vsel %vm167, %v162, %v164
  %v173 = vsel %vm167, %v164, %v166
  %174 = vrot.lane.b32.xlu0 %v30, 91
  %v175 = vpop.permute.xlu0 %174
  %176 = vrot.lane.b32.xlu0 %v31, 91
  %v177 = vpop.permute.xlu0 %176
  %178 = vrot.lane.b32.xlu0 %v32, 91
  %v179 = vpop.permute.xlu0 %178
  %180 = vrot.lane.b32.xlu0 %v33, 91
  %v181 = vpop.permute.xlu0 %180
  %182 = vrot.lane.b32.xlu0 %v34, 91
  %v183 = vpop.permute.xlu0 %182
  %184 = vrot.lane.b32.xlu0 %v35, 91
  %v185 = vpop.permute.xlu0 %184
  %186 = vrot.lane.b32.xlu0 %v36, 91
  %v187 = vpop.permute.xlu0 %186
  %vm188 = vcmask 744448
  %v189 = vsel %vm188, %v175, %v177
  %v190 = vsel %vm188, %v177, %v179
  %v191 = vsel %vm188, %v179, %v181
  %v192 = vsel %vm188, %v181, %v183
  %v193 = vsel %vm188, %v183, %v185
  %v194 = vsel %vm188, %v185, %v187
  %195 = vrot.lane.b32.xlu0 %v30, 90
  %v196 = vpop.permute.xlu0 %195
  %197 = vrot.lane.b32.xlu0 %v31, 90
  %v198 = vpop.permute.xlu0 %197
  %199 = vrot.lane.b32.xlu0 %v32, 90
  %v200 = vpop.permute.xlu0 %199
  %201 = vrot.lane.b32.xlu0 %v33, 90
  %v202 = vpop.permute.xlu0 %201
  %203 = vrot.lane.b32.xlu0 %v34, 90
  %v204 = vpop.permute.xlu0 %203
  %205 = vrot.lane.b32.xlu0 %v35, 90
  %v206 = vpop.permute.xlu0 %205
  %207 = vrot.lane.b32.xlu0 %v36, 90
  %v208 = vpop.permute.xlu0 %207
  %vm209 = vcmask 736256
  %v210 = vsel %vm209, %v196, %v198
  %v211 = vsel %vm209, %v198, %v200
  %v212 = vsel %vm209, %v200, %v202
  %v213 = vsel %vm209, %v202, %v204
  %v214 = vsel %vm209, %v204, %v206
  %v215 = vsel %vm209, %v206, %v208
  %v216 = vld [vmem:[%s1] sm:$0xff]
  %v217 = vld [vmem:[%s1 + $0x8] sm:$0xff]
  %v218 = vld [vmem:[%s2] sm:$0xff]
  %v219 = vld [vmem:[%s2 + $0x8] sm:$0xff]
  %221 = vset.pattern.permute.xlu0 0
  %222 = vperm.xlu0 %221, %v218
  %v223 = vpop.permute.xlu0 %222
  %226 = vset.pattern.permute.xlu0 0
  %227 = vperm.xlu0 %226, %v219
  %v228 = vpop.permute.xlu0 %227
  %230 = vrot.lane.b32.xlu0 %v23, 19
  %v231 = vpop.permute.xlu0 %230
  %232 = vrot.lane.b32.xlu0 %v24, 19
  %v233 = vpop.permute.xlu0 %232
  %234 = vrot.lane.b32.xlu0 %v25, 19
  %v235 = vpop.permute.xlu0 %234
  %236 = vrot.lane.b32.xlu0 %v26, 19
  %v237 = vpop.permute.xlu0 %236
  %238 = vrot.lane.b32.xlu0 %v27, 19
  %v239 = vpop.permute.xlu0 %238
  %240 = vrot.lane.b32.xlu0 %v28, 19
  %v241 = vpop.permute.xlu0 %240
  %242 = vrot.lane.b32.xlu0 %v29, 19
  %v243 = vpop.permute.xlu0 %242
  %244 = vrot.lane.b32.xlu0 %v59, 19
  %v245 = vpop.permute.xlu0 %244
  %246 = vrot.lane.b32.xlu0 %v60, 19
  %v247 = vpop.permute.xlu0 %246
  %248 = vrot.lane.b32.xlu0 %v61, 19
  %v249 = vpop.permute.xlu0 %248
  %250 = vrot.lane.b32.xlu0 %v62, 19
  %v251 = vpop.permute.xlu0 %250
  %252 = vrot.lane.b32.xlu0 %v63, 19
  %v253 = vpop.permute.xlu0 %252
  %254 = vrot.lane.b32.xlu0 %v64, 19
  %v255 = vpop.permute.xlu0 %254
  %256 = vrot.lane.b32.xlu0 %v57, 19
  %v257 = vpop.permute.xlu0 %256
  %258 = vrot.lane.b32.xlu0 %v80, 19
  %v259 = vpop.permute.xlu0 %258
  %260 = vrot.lane.b32.xlu0 %v81, 19
  %v261 = vpop.permute.xlu0 %260
  %262 = vrot.lane.b32.xlu0 %v82, 19
  %v263 = vpop.permute.xlu0 %262
  %264 = vrot.lane.b32.xlu0 %v83, 19
  %v265 = vpop.permute.xlu0 %264
  %266 = vrot.lane.b32.xlu0 %v84, 19
  %v267 = vpop.permute.xlu0 %266
  %268 = vrot.lane.b32.xlu0 %v85, 19
  %v269 = vpop.permute.xlu0 %268
  %270 = vrot.lane.b32.xlu0 %v78, 19
  %v271 = vpop.permute.xlu0 %270
  %272 = vrot.lane.b32.xlu0 %v101, 19
  %v273 = vpop.permute.xlu0 %272
  %274 = vrot.lane.b32.xlu0 %v102, 19
  %v275 = vpop.permute.xlu0 %274
  %276 = vrot.lane.b32.xlu0 %v103, 19
  %v277 = vpop.permute.xlu0 %276
  %278 = vrot.lane.b32.xlu0 %v104, 19
  %v279 = vpop.permute.xlu0 %278
  %280 = vrot.lane.b32.xlu0 %v105, 19
  %v281 = vpop.permute.xlu0 %280
  %282 = vrot.lane.b32.xlu0 %v106, 19
  %v283 = vpop.permute.xlu0 %282
  %284 = vrot.lane.b32.xlu0 %v99, 19
  %v285 = vpop.permute.xlu0 %284
  %286 = vrot.lane.b32.xlu0 %v108, 19
  %v287 = vpop.permute.xlu0 %286
  %288 = vrot.lane.b32.xlu0 %v120, 19
  %v289 = vpop.permute.xlu0 %288
  %290 = vrot.lane.b32.xlu0 %v121, 19
  %v291 = vpop.permute.xlu0 %290
  %292 = vrot.lane.b32.xlu0 %v122, 19
  %v293 = vpop.permute.xlu0 %292
  %294 = vrot.lane.b32.xlu0 %v123, 19
  %v295 = vpop.permute.xlu0 %294
  %296 = vrot.lane.b32.xlu0 %v124, 19
  %v297 = vpop.permute.xlu0 %296
  %298 = vrot.lane.b32.xlu0 %v118, 19
  %v299 = vpop.permute.xlu0 %298
  %300 = vrot.lane.b32.xlu0 %v133, 19
  %v301 = vpop.permute.xlu0 %300
  %302 = vrot.lane.b32.xlu0 %v147, 19
  %v303 = vpop.permute.xlu0 %302
  %304 = vrot.lane.b32.xlu0 %v148, 19
  %v305 = vpop.permute.xlu0 %304
  %306 = vrot.lane.b32.xlu0 %v149, 19
  %v307 = vpop.permute.xlu0 %306
  %308 = vrot.lane.b32.xlu0 %v150, 19
  %v309 = vpop.permute.xlu0 %308
  %310 = vrot.lane.b32.xlu0 %v151, 19
  %v311 = vpop.permute.xlu0 %310
  %312 = vrot.lane.b32.xlu0 %v152, 19
  %v313 = vpop.permute.xlu0 %312
  %314 = vrot.lane.b32.xlu0 %v154, 19
  %v315 = vpop.permute.xlu0 %314
  %316 = vrot.lane.b32.xlu0 %v168, 19
  %v317 = vpop.permute.xlu0 %316
  %318 = vrot.lane.b32.xlu0 %v169, 19
  %v319 = vpop.permute.xlu0 %318
  %320 = vrot.lane.b32.xlu0 %v170, 19
  %v321 = vpop.permute.xlu0 %320
  %322 = vrot.lane.b32.xlu0 %v171, 19
  %v323 = vpop.permute.xlu0 %322
  %324 = vrot.lane.b32.xlu0 %v172, 19
  %v325 = vpop.permute.xlu0 %324
  %326 = vrot.lane.b32.xlu0 %v173, 19
  %v327 = vpop.permute.xlu0 %326
  %328 = vrot.lane.b32.xlu0 %v175, 19
  %v329 = vpop.permute.xlu0 %328
  %330 = vrot.lane.b32.xlu0 %v189, 19
  %v331 = vpop.permute.xlu0 %330
  %332 = vrot.lane.b32.xlu0 %v190, 19
  %v333 = vpop.permute.xlu0 %332
  %334 = vrot.lane.b32.xlu0 %v191, 19
  %v335 = vpop.permute.xlu0 %334
  %336 = vrot.lane.b32.xlu0 %v192, 19
  %v337 = vpop.permute.xlu0 %336
  %338 = vrot.lane.b32.xlu0 %v193, 19
  %v339 = vpop.permute.xlu0 %338
  %340 = vrot.lane.b32.xlu0 %v194, 19
  %v341 = vpop.permute.xlu0 %340
  %342 = vrot.lane.b32.xlu0 %v196, 19
  %v343 = vpop.permute.xlu0 %342
  %344 = vrot.lane.b32.xlu0 %v210, 19
  %v345 = vpop.permute.xlu0 %344
  %346 = vrot.lane.b32.xlu0 %v211, 19
  %v347 = vpop.permute.xlu0 %346
  %348 = vrot.lane.b32.xlu0 %v212, 19
  %v349 = vpop.permute.xlu0 %348
  %350 = vrot.lane.b32.xlu0 %v213, 19
  %v351 = vpop.permute.xlu0 %350
  %352 = vrot.lane.b32.xlu0 %v214, 19
  %v353 = vpop.permute.xlu0 %352
  %354 = vrot.lane.b32.xlu0 %v215, 19
  %v355 = vpop.permute.xlu0 %354
  %vm356 = vcmask 154624
  %v357 = vsel %vm356, %v231, %v233
  %v358 = vsel %vm356, %v233, %v235
  %v359 = vsel %vm356, %v235, %v237
  %v360 = vsel %vm356, %v237, %v239
  %v361 = vsel %vm356, %v239, %v241
  %v362 = vsel %vm356, %v241, %v243
  %v363 = vsel %vm356, %v245, %v247
  %v364 = vsel %vm356, %v247, %v249
  %v365 = vsel %vm356, %v249, %v251
  %v366 = vsel %vm356, %v251, %v253
  %v367 = vsel %vm356, %v253, %v255
  %v368 = vsel %vm356, %v255, %v257
  %v369 = vsel %vm356, %v259, %v261
  %v370 = vsel %vm356, %v261, %v263
  %v371 = vsel %vm356, %v263, %v265
  %v372 = vsel %vm356, %v265, %v267
  %v373 = vsel %vm356, %v267, %v269
  %v374 = vsel %vm356, %v269, %v271
  %v375 = vsel %vm356, %v273, %v275
  %v376 = vsel %vm356, %v275, %v277
  %v377 = vsel %vm356, %v277, %v279
  %v378 = vsel %vm356, %v279, %v281
  %v379 = vsel %vm356, %v281, %v283
  %v380 = vsel %vm356, %v283, %v285
  %v381 = vsel %vm356, %v287, %v289
  %v382 = vsel %vm356, %v289, %v291
  %v383 = vsel %vm356, %v291, %v293
  %v384 = vsel %vm356, %v293, %v295
  %v385 = vsel %vm356, %v295, %v297
  %v386 = vsel %vm356, %v297, %v299
  %v387 = vsel %vm356, %v301, %v303
  %v388 = vsel %vm356, %v303, %v305
  %v389 = vsel %vm356, %v305, %v307
  %v390 = vsel %vm356, %v307, %v309
  %v391 = vsel %vm356, %v309, %v311
  %v392 = vsel %vm356, %v311, %v313
  %v393 = vsel %vm356, %v315, %v317
  %v394 = vsel %vm356, %v317, %v319
  %v395 = vsel %vm356, %v319, %v321
  %v396 = vsel %vm356, %v321, %v323
  %v397 = vsel %vm356, %v323, %v325
  %v398 = vsel %vm356, %v325, %v327
  %v399 = vsel %vm356, %v329, %v331
  %v400 = vsel %vm356, %v331, %v333
  %v401 = vsel %vm356, %v333, %v335
  %v402 = vsel %vm356, %v335, %v337
  %v403 = vsel %vm356, %v337, %v339
  %v404 = vsel %vm356, %v339, %v341
  %v405 = vsel %vm356, %v343, %v345
  %v406 = vsel %vm356, %v345, %v347
  %v407 = vsel %vm356, %v347, %v349
  %v408 = vsel %vm356, %v349, %v351
  %v409 = vsel %vm356, %v351, %v353
  %v410 = vsel %vm356, %v353, %v355
  %vm465 = vcmask 588800
  %v467 = vsel %vm465, %v216, 0
  %v470 = vsel %vm465, %v217, 0
  %472 = vmatprep.subr.mxu0 0.0
  %473 = vmatpush1.msra.mxu0 0.0
  %474 = vmatprep.subr.mxu0 0.0
  %475 = vmatpush1.msra.mxu0 0.0
  %476 = vmatprep.subr.mxu0 0.0
  %477 = vmatpush1.msra.mxu0 0.0
  %478 = vmatprep.subr.mxu0 0.0
  %479 = vmatpush1.msra.mxu0 0.0
  %480 = vmatprep.subr.mxu0 0.0
  %481 = vmatpush1.msra.mxu0 0.0
  %482 = vmatprep.subr.mxu0 0.0
  %483 = vmatpush1.msra.mxu0 0.0
  %484 = vmatprep.subr.mxu0 0.0
  %485 = vmatpush1.msra.mxu0 0.0
  %486 = vmatprep.subr.mxu0 %v406
  %487 = vmatpush1.msra.mxu0 %v405
  %488 = vmatprep.subr.mxu0 %v400
  %489 = vmatpush1.msra.mxu0 %v399
  %490 = vmatprep.subr.mxu0 %v394
  %491 = vmatpush1.msra.mxu0 %v393
  %492 = vmatprep.subr.mxu0 %v388
  %493 = vmatpush1.msra.mxu0 %v387
  %494 = vmatprep.subr.mxu0 %v382
  %495 = vmatpush1.msra.mxu0 %v381
  %496 = vmatprep.subr.mxu0 %v376
  %497 = vmatpush1.msra.mxu0 %v375
  %498 = vmatprep.subr.mxu0 %v370
  %499 = vmatpush1.msra.mxu0 %v369
  %500 = vmatprep.subr.mxu0 %v364
  %501 = vmatpush1.msra.mxu0 %v363
  %502 = vmatprep.subr.mxu0 %v358
  %503 = vmatpush1.msra.mxu0 %v357
  %504 = vmatprep.subr.mxu0 0.0
  %505 = vmatpush2.msra.mxu0 0.0
  %506 = vmatprep.subr.mxu0 0.0
  %507 = vmatpush2.msra.mxu0 0.0
  %508 = vmatprep.subr.mxu0 0.0
  %509 = vmatpush2.msra.mxu0 0.0
  %510 = vmatprep.subr.mxu0 0.0
  %511 = vmatpush2.msra.mxu0 0.0
  %512 = vmatprep.subr.mxu0 0.0
  %513 = vmatpush2.msra.mxu0 0.0
  %514 = vmatprep.subr.mxu0 0.0
  %515 = vmatpush2.msra.mxu0 0.0
  %516 = vmatprep.subr.mxu0 0.0
  %517 = vmatpush2.msra.mxu0 0.0
  %518 = vmatprep.subr.mxu0 0.0
  %519 = vmatpush2.msra.mxu0 0.0
  %520 = vmatprep.subr.mxu0 0.0
  %521 = vmatpush2.msra.mxu0 0.0
  %522 = vmatprep.subr.mxu0 0.0
  %523 = vmatpush2.msra.mxu0 0.0
  %524 = vmatprep.subr.mxu0 0.0
  %525 = vmatpush2.msra.mxu0 0.0
  %526 = vmatprep.subr.mxu0 0.0
  %527 = vmatpush2.msra.mxu0 0.0
  %528 = vmatprep.subr.mxu0 0.0
  %529 = vmatpush2.msra.mxu0 0.0
  %530 = vmatprep.subr.mxu0 0.0
  %531 = vmatpush2.msra.mxu0 0.0
  %532 = vmatprep.subr.mxu0 0.0
  %533 = vmatpush2.msra.mxu0 0.0
  %534 = vmatprep.subr.mxu0 0.0
  %535 = vmatpush2.msra.mxu0 0.0
  %536 = vmatprep.mubr.f32.mxu0 0.0
  %537 = vmatmul.mubr.f32.gmra.mxu0 %v467
  %v538 = vpop.f32.mrf.mxu0
  %v539 = vadd.f32 %v223, %v538
  %v540 = vpop.f32.mrf.mxu0
  %v541 = vadd.f32 %v223, %v540
  %542 = vmatprep.mubr.f32.mxu0 0.0
  %543 = vmatmul.mubr.f32.gmra.mxu0 %v470
  %v544 = vpop.f32.mrf.mxu0
  %v545 = vadd.f32 %v228, %v544
  %v546 = vpop.f32.mrf.mxu0
  %v547 = vadd.f32 %v228, %v546
  %548 = vdwg.mxu0
  %549 = vmatprep.subr.mxu0 0.0
  %550 = vmatpush1.msra.mxu0 0.0
  %551 = vmatprep.subr.mxu0 0.0
  %552 = vmatpush1.msra.mxu0 0.0
  %553 = vmatprep.subr.mxu0 0.0
  %554 = vmatpush1.msra.mxu0 0.0
  %555 = vmatprep.subr.mxu0 0.0
  %556 = vmatpush1.msra.mxu0 0.0
  %557 = vmatprep.subr.mxu0 0.0
  %558 = vmatpush1.msra.mxu0 0.0
  %559 = vmatprep.subr.mxu0 0.0
  %560 = vmatpush1.msra.mxu0 0.0
  %561 = vmatprep.subr.mxu0 0.0
  %562 = vmatpush1.msra.mxu0 0.0
  %563 = vmatprep.subr.mxu0 %v408
  %564 = vmatpush1.msra.mxu0 %v407
  %565 = vmatprep.subr.mxu0 %v402
  %566 = vmatpush1.msra.mxu0 %v401
  %567 = vmatprep.subr.mxu0 %v396
  %568 = vmatpush1.msra.mxu0 %v395
  %569 = vmatprep.subr.mxu0 %v390
  %570 = vmatpush1.msra.mxu0 %v389
  %571 = vmatprep.subr.mxu0 %v384
  %572 = vmatpush1.msra.mxu0 %v383
  %573 = vmatprep.subr.mxu0 %v378
  %574 = vmatpush1.msra.mxu0 %v377
  %575 = vmatprep.subr.mxu0 %v372
  %576 = vmatpush1.msra.mxu0 %v371
  %577 = vmatprep.subr.mxu0 %v366
  %578 = vmatpush1.msra.mxu0 %v365
  %579 = vmatprep.subr.mxu0 %v360
  %580 = vmatpush1.msra.mxu0 %v359
  %581 = vmatprep.subr.mxu0 0.0
  %582 = vmatpush2.msra.mxu0 0.0
  %583 = vmatprep.subr.mxu0 0.0
  %584 = vmatpush2.msra.mxu0 0.0
  %585 = vmatprep.subr.mxu0 0.0
  %586 = vmatpush2.msra.mxu0 0.0
  %587 = vmatprep.subr.mxu0 0.0
  %588 = vmatpush2.msra.mxu0 0.0
  %589 = vmatprep.subr.mxu0 0.0
  %590 = vmatpush2.msra.mxu0 0.0
  %591 = vmatprep.subr.mxu0 0.0
  %592 = vmatpush2.msra.mxu0 0.0
  %593 = vmatprep.subr.mxu0 0.0
  %594 = vmatpush2.msra.mxu0 0.0
  %595 = vmatprep.subr.mxu0 0.0
  %596 = vmatpush2.msra.mxu0 0.0
  %597 = vmatprep.subr.mxu0 0.0
  %598 = vmatpush2.msra.mxu0 0.0
  %599 = vmatprep.subr.mxu0 0.0
  %600 = vmatpush2.msra.mxu0 0.0
  %601 = vmatprep.subr.mxu0 0.0
  %602 = vmatpush2.msra.mxu0 0.0
  %603 = vmatprep.subr.mxu0 0.0
  %604 = vmatpush2.msra.mxu0 0.0
  %605 = vmatprep.subr.mxu0 0.0
  %606 = vmatpush2.msra.mxu0 0.0
  %607 = vmatprep.subr.mxu0 0.0
  %608 = vmatpush2.msra.mxu0 0.0
  %609 = vmatprep.subr.mxu0 0.0
  %610 = vmatpush2.msra.mxu0 0.0
  %611 = vmatprep.subr.mxu0 0.0
  %612 = vmatpush2.msra.mxu0 0.0
  %613 = vmatprep.mubr.f32.mxu0 0.0
  %614 = vmatmul.mubr.f32.gmra.mxu0 %v467
  %v615 = vpop.f32.mrf.mxu0
  %v616 = vadd.f32 %v223, %v615
  %v617 = vpop.f32.mrf.mxu0
  %v618 = vadd.f32 %v223, %v617
  %619 = vmatprep.mubr.f32.mxu0 0.0
  %620 = vmatmul.mubr.f32.gmra.mxu0 %v470
  %v621 = vpop.f32.mrf.mxu0
  %v622 = vadd.f32 %v228, %v621
  %v623 = vpop.f32.mrf.mxu0
  %v624 = vadd.f32 %v228, %v623
  %625 = vdwg.mxu0
  %626 = vmatprep.subr.mxu0 0.0
  %627 = vmatpush1.msra.mxu0 0.0
  %628 = vmatprep.subr.mxu0 0.0
  %629 = vmatpush1.msra.mxu0 0.0
  %630 = vmatprep.subr.mxu0 0.0
  %631 = vmatpush1.msra.mxu0 0.0
  %632 = vmatprep.subr.mxu0 0.0
  %633 = vmatpush1.msra.mxu0 0.0
  %634 = vmatprep.subr.mxu0 0.0
  %635 = vmatpush1.msra.mxu0 0.0
  %636 = vmatprep.subr.mxu0 0.0
  %637 = vmatpush1.msra.mxu0 0.0
  %638 = vmatprep.subr.mxu0 0.0
  %639 = vmatpush1.msra.mxu0 0.0
  %640 = vmatprep.subr.mxu0 %v410
  %641 = vmatpush1.msra.mxu0 %v409
  %642 = vmatprep.subr.mxu0 %v404
  %643 = vmatpush1.msra.mxu0 %v403
  %644 = vmatprep.subr.mxu0 %v398
  %645 = vmatpush1.msra.mxu0 %v397
  %646 = vmatprep.subr.mxu0 %v392
  %647 = vmatpush1.msra.mxu0 %v391
  %648 = vmatprep.subr.mxu0 %v386
  %649 = vmatpush1.msra.mxu0 %v385
  %650 = vmatprep.subr.mxu0 %v380
  %651 = vmatpush1.msra.mxu0 %v379
  %652 = vmatprep.subr.mxu0 %v374
  %653 = vmatpush1.msra.mxu0 %v373
  %654 = vmatprep.subr.mxu0 %v368
  %655 = vmatpush1.msra.mxu0 %v367
  %656 = vmatprep.subr.mxu0 %v362
  %657 = vmatpush1.msra.mxu0 %v361
  %658 = vmatprep.subr.mxu0 0.0
  %659 = vmatpush2.msra.mxu0 0.0
  %660 = vmatprep.subr.mxu0 0.0
  %661 = vmatpush2.msra.mxu0 0.0
  %662 = vmatprep.subr.mxu0 0.0
  %663 = vmatpush2.msra.mxu0 0.0
  %664 = vmatprep.subr.mxu0 0.0
  %665 = vmatpush2.msra.mxu0 0.0
  %666 = vmatprep.subr.mxu0 0.0
  %667 = vmatpush2.msra.mxu0 0.0
  %668 = vmatprep.subr.mxu0 0.0
  %669 = vmatpush2.msra.mxu0 0.0
  %670 = vmatprep.subr.mxu0 0.0
  %671 = vmatpush2.msra.mxu0 0.0
  %672 = vmatprep.subr.mxu0 0.0
  %673 = vmatpush2.msra.mxu0 0.0
  %674 = vmatprep.subr.mxu0 0.0
  %675 = vmatpush2.msra.mxu0 0.0
  %676 = vmatprep.subr.mxu0 0.0
  %677 = vmatpush2.msra.mxu0 0.0
  %678 = vmatprep.subr.mxu0 0.0
  %679 = vmatpush2.msra.mxu0 0.0
  %680 = vmatprep.subr.mxu0 0.0
  %681 = vmatpush2.msra.mxu0 0.0
  %682 = vmatprep.subr.mxu0 0.0
  %683 = vmatpush2.msra.mxu0 0.0
  %684 = vmatprep.subr.mxu0 0.0
  %685 = vmatpush2.msra.mxu0 0.0
  %686 = vmatprep.subr.mxu0 0.0
  %687 = vmatpush2.msra.mxu0 0.0
  %688 = vmatprep.subr.mxu0 0.0
  %689 = vmatpush2.msra.mxu0 0.0
  %690 = vmatprep.mubr.f32.mxu0 0.0
  %691 = vmatmul.mubr.f32.gmra.mxu0 %v467
  %v692 = vpop.f32.mrf.mxu0
  %v693 = vadd.f32 %v223, %v692
  %v694 = vpop.f32.mrf.mxu0
  %v695 = vadd.f32 %v223, %v694
  %696 = vmatprep.mubr.f32.mxu0 0.0
  %697 = vmatmul.mubr.f32.gmra.mxu0 %v470
  %v698 = vpop.f32.mrf.mxu0
  %v699 = vadd.f32 %v228, %v698
  %v700 = vpop.f32.mrf.mxu0
  %v701 = vadd.f32 %v228, %v700
  %702 = vdwg.mxu0
  %v703 = vmax.f32 %v539, 0.0
  %v704 = vmax.f32 %v541, 0.0
  %v705 = vmax.f32 %v616, 0.0
  %v706 = vmax.f32 %v618, 0.0
  %v707 = vmax.f32 %v693, 0.0
  %v708 = vmax.f32 %v695, 0.0
  %v709 = vmax.f32 %v545, 0.0
  %v710 = vmax.f32 %v547, 0.0
  %v711 = vmax.f32 %v622, 0.0
  %v712 = vmax.f32 %v624, 0.0
  %v713 = vmax.f32 %v699, 0.0
  %v714 = vmax.f32 %v701, 0.0
  %v715 = vld [vmem:[%s5] sm:$0x3f]
  %v717 = vlaneseq
  %v718 = vshrl.u32 %v717, 7
  %v719 = vsub.s32 0, %v718
  %v720 = vrot.slane %v715, %v719
  %v721 = vlaneseq
  %v722 = vshrl.u32 %v721, 7
  %v723 = vsub.s32 1, %v722
  %v724 = vrot.slane %v715, %v723
  %v725 = vlaneseq
  %v726 = vshrl.u32 %v725, 7
  %v727 = vsub.s32 2, %v726
  %v728 = vrot.slane %v715, %v727
  %v729 = vlaneseq
  %v730 = vshrl.u32 %v729, 7
  %v731 = vsub.s32 3, %v730
  %v732 = vrot.slane %v715, %v731
  %v733 = vlaneseq
  %v734 = vshrl.u32 %v733, 7
  %v735 = vsub.s32 4, %v734
  %v736 = vrot.slane %v715, %v735
  %v737 = vlaneseq
  %v738 = vshrl.u32 %v737, 7
  %v739 = vsub.s32 5, %v738
  %v740 = vrot.slane %v715, %v739
  %v747 = vmul.f32 %v703, %v720
  %v748 = vmul.f32 %v704, %v724
  %v749 = vmul.f32 %v705, %v728
  %v750 = vmul.f32 %v706, %v732
  %v751 = vmul.f32 %v707, %v736
  %v752 = vmul.f32 %v708, %v740
  %v753 = vmul.f32 %v709, %v720
  %v754 = vmul.f32 %v710, %v724
  %v755 = vmul.f32 %v711, %v728
  %v756 = vmul.f32 %v712, %v732
  %v757 = vmul.f32 %v713, %v736
  %v758 = vmul.f32 %v714, %v740
  %759 = vst [vmem:[#allocation2] sm:$0xff] 0.0
  %760 = vst [vmem:[#allocation2 + $0x40] sm:$0xff] 0.0
  %761 = vst [vmem:[#allocation2 + $0x38] sm:$0xff] 0.0
  %762 = vst [vmem:[#allocation2 + $0x78] sm:$0xff] 0.0
  %763 = vst [vmem:[#allocation2 + $0x8] sm:$0xff] %v747
  %764 = vst [vmem:[#allocation2 + $0x10] sm:$0xff] %v748
  %765 = vst [vmem:[#allocation2 + $0x18] sm:$0xff] %v749
  %766 = vst [vmem:[#allocation2 + $0x20] sm:$0xff] %v750
  %767 = vst [vmem:[#allocation2 + $0x28] sm:$0xff] %v751
  %768 = vst [vmem:[#allocation2 + $0x30] sm:$0xff] %v752
  %769 = vst [vmem:[#allocation2 + $0x48] sm:$0xff] %v753
  %770 = vst [vmem:[#allocation2 + $0x50] sm:$0xff] %v754
  %771 = vst [vmem:[#allocation2 + $0x58] sm:$0xff] %v755
  %772 = vst [vmem:[#allocation2 + $0x60] sm:$0xff] %v756
  %773 = vst [vmem:[#allocation2 + $0x68] sm:$0xff] %v757
  %774 = vst [vmem:[#allocation2 + $0x70] sm:$0xff] %v758
  %v775 = vld [vmem:[#allocation2] sm:$0xff]
  %v776 = vld [vmem:[#allocation2 + $0x8] sm:$0xff]
  %v777 = vld [vmem:[#allocation2 + $0x10] sm:$0xff]
  %v778 = vld [vmem:[#allocation2 + $0x18] sm:$0xff]
  %v779 = vld [vmem:[#allocation2 + $0x20] sm:$0xff]
  %v780 = vld [vmem:[#allocation2 + $0x28] sm:$0xff]
  %v781 = vld [vmem:[#allocation2 + $0x30] sm:$0xff]
  %v782 = vld [vmem:[#allocation2 + $0x40] sm:$0xff]
  %v783 = vld [vmem:[#allocation2 + $0x48] sm:$0xff]
  %v784 = vld [vmem:[#allocation2 + $0x50] sm:$0xff]
  %v785 = vld [vmem:[#allocation2 + $0x58] sm:$0xff]
  %v786 = vld [vmem:[#allocation2 + $0x60] sm:$0xff]
  %v787 = vld [vmem:[#allocation2 + $0x68] sm:$0xff]
  %v788 = vld [vmem:[#allocation2 + $0x70] sm:$0xff]
  %v789 = vld [vmem:[#allocation2 + $0x8] sm:$0xff]
  %v790 = vld [vmem:[#allocation2 + $0x10] sm:$0xff]
  %v791 = vld [vmem:[#allocation2 + $0x18] sm:$0xff]
  %v792 = vld [vmem:[#allocation2 + $0x20] sm:$0xff]
  %v793 = vld [vmem:[#allocation2 + $0x28] sm:$0xff]
  %v794 = vld [vmem:[#allocation2 + $0x30] sm:$0xff]
  %v795 = vld [vmem:[#allocation2 + $0x38] sm:$0xff]
  %v796 = vld [vmem:[#allocation2 + $0x48] sm:$0xff]
  %v797 = vld [vmem:[#allocation2 + $0x50] sm:$0xff]
  %v798 = vld [vmem:[#allocation2 + $0x58] sm:$0xff]
  %v799 = vld [vmem:[#allocation2 + $0x60] sm:$0xff]
  %v800 = vld [vmem:[#allocation2 + $0x68] sm:$0xff]
  %v801 = vld [vmem:[#allocation2 + $0x70] sm:$0xff]
  %v802 = vld [vmem:[#allocation2 + $0x78] sm:$0xff]
  %817 = vrot.lane.b32.xlu0 %v775, 127
  %v818 = vpop.permute.xlu0 %817
  %819 = vrot.lane.b32.xlu0 %v776, 127
  %v820 = vpop.permute.xlu0 %819
  %821 = vrot.lane.b32.xlu0 %v777, 127
  %v822 = vpop.permute.xlu0 %821
  %823 = vrot.lane.b32.xlu0 %v778, 127
  %v824 = vpop.permute.xlu0 %823
  %825 = vrot.lane.b32.xlu0 %v779, 127
  %v826 = vpop.permute.xlu0 %825
  %827 = vrot.lane.b32.xlu0 %v780, 127
  %v828 = vpop.permute.xlu0 %827
  %829 = vrot.lane.b32.xlu0 %v781, 127
  %v830 = vpop.permute.xlu0 %829
  %831 = vrot.lane.b32.xlu0 %v782, 127
  %v832 = vpop.permute.xlu0 %831
  %833 = vrot.lane.b32.xlu0 %v783, 127
  %v834 = vpop.permute.xlu0 %833
  %835 = vrot.lane.b32.xlu0 %v784, 127
  %v836 = vpop.permute.xlu0 %835
  %837 = vrot.lane.b32.xlu0 %v785, 127
  %v838 = vpop.permute.xlu0 %837
  %839 = vrot.lane.b32.xlu0 %v786, 127
  %v840 = vpop.permute.xlu0 %839
  %841 = vrot.lane.b32.xlu0 %v787, 127
  %v842 = vpop.permute.xlu0 %841
  %843 = vrot.lane.b32.xlu0 %v788, 127
  %v844 = vpop.permute.xlu0 %843
  %v845 = vsel %vm58, %v818, %v820
  %v846 = vsel %vm58, %v820, %v822
  %v847 = vsel %vm58, %v822, %v824
  %v848 = vsel %vm58, %v824, %v826
  %v849 = vsel %vm58, %v826, %v828
  %v850 = vsel %vm58, %v828, %v830
  %v851 = vsel %vm58, %v832, %v834
  %v852 = vsel %vm58, %v834, %v836
  %v853 = vsel %vm58, %v836, %v838
  %v854 = vsel %vm58, %v838, %v840
  %v855 = vsel %vm58, %v840, %v842
  %v856 = vsel %vm58, %v842, %v844
  %857 = vrot.lane.b32.xlu0 %v775, 126
  %v858 = vpop.permute.xlu0 %857
  %859 = vrot.lane.b32.xlu0 %v776, 126
  %v860 = vpop.permute.xlu0 %859
  %861 = vrot.lane.b32.xlu0 %v777, 126
  %v862 = vpop.permute.xlu0 %861
  %863 = vrot.lane.b32.xlu0 %v778, 126
  %v864 = vpop.permute.xlu0 %863
  %865 = vrot.lane.b32.xlu0 %v779, 126
  %v866 = vpop.permute.xlu0 %865
  %867 = vrot.lane.b32.xlu0 %v780, 126
  %v868 = vpop.permute.xlu0 %867
  %869 = vrot.lane.b32.xlu0 %v781, 126
  %v870 = vpop.permute.xlu0 %869
  %871 = vrot.lane.b32.xlu0 %v782, 126
  %v872 = vpop.permute.xlu0 %871
  %873 = vrot.lane.b32.xlu0 %v783, 126
  %v874 = vpop.permute.xlu0 %873
  %875 = vrot.lane.b32.xlu0 %v784, 126
  %v876 = vpop.permute.xlu0 %875
  %877 = vrot.lane.b32.xlu0 %v785, 126
  %v878 = vpop.permute.xlu0 %877
  %879 = vrot.lane.b32.xlu0 %v786, 126
  %v880 = vpop.permute.xlu0 %879
  %881 = vrot.lane.b32.xlu0 %v787, 126
  %v882 = vpop.permute.xlu0 %881
  %883 = vrot.lane.b32.xlu0 %v788, 126
  %v884 = vpop.permute.xlu0 %883
  %v885 = vsel %vm79, %v858, %v860
  %v886 = vsel %vm79, %v860, %v862
  %v887 = vsel %vm79, %v862, %v864
  %v888 = vsel %vm79, %v864, %v866
  %v889 = vsel %vm79, %v866, %v868
  %v890 = vsel %vm79, %v868, %v870
  %v891 = vsel %vm79, %v872, %v874
  %v892 = vsel %vm79, %v874, %v876
  %v893 = vsel %vm79, %v876, %v878
  %v894 = vsel %vm79, %v878, %v880
  %v895 = vsel %vm79, %v880, %v882
  %v896 = vsel %vm79, %v882, %v884
  %897 = vrot.lane.b32.xlu0 %v775, 110
  %v898 = vpop.permute.xlu0 %897
  %899 = vrot.lane.b32.xlu0 %v776, 110
  %v900 = vpop.permute.xlu0 %899
  %901 = vrot.lane.b32.xlu0 %v777, 110
  %v902 = vpop.permute.xlu0 %901
  %903 = vrot.lane.b32.xlu0 %v778, 110
  %v904 = vpop.permute.xlu0 %903
  %905 = vrot.lane.b32.xlu0 %v779, 110
  %v906 = vpop.permute.xlu0 %905
  %907 = vrot.lane.b32.xlu0 %v780, 110
  %v908 = vpop.permute.xlu0 %907
  %909 = vrot.lane.b32.xlu0 %v781, 110
  %v910 = vpop.permute.xlu0 %909
  %911 = vrot.lane.b32.xlu0 %v782, 110
  %v912 = vpop.permute.xlu0 %911
  %913 = vrot.lane.b32.xlu0 %v783, 110
  %v914 = vpop.permute.xlu0 %913
  %915 = vrot.lane.b32.xlu0 %v784, 110
  %v916 = vpop.permute.xlu0 %915
  %917 = vrot.lane.b32.xlu0 %v785, 110
  %v918 = vpop.permute.xlu0 %917
  %919 = vrot.lane.b32.xlu0 %v786, 110
  %v920 = vpop.permute.xlu0 %919
  %921 = vrot.lane.b32.xlu0 %v787, 110
  %v922 = vpop.permute.xlu0 %921
  %923 = vrot.lane.b32.xlu0 %v788, 110
  %v924 = vpop.permute.xlu0 %923
  %v925 = vsel %vm100, %v898, %v900
  %v926 = vsel %vm100, %v900, %v902
  %v927 = vsel %vm100, %v902, %v904
  %v928 = vsel %vm100, %v904, %v906
  %v929 = vsel %vm100, %v906, %v908
  %v930 = vsel %vm100, %v908, %v910
  %v931 = vsel %vm100, %v912, %v914
  %v932 = vsel %vm100, %v914, %v916
  %v933 = vsel %vm100, %v916, %v918
  %v934 = vsel %vm100, %v918, %v920
  %v935 = vsel %vm100, %v920, %v922
  %v936 = vsel %vm100, %v922, %v924
  %937 = vrot.lane.b32.xlu0 %v776, 109
  %v938 = vpop.permute.xlu0 %937
  %939 = vrot.lane.b32.xlu0 %v777, 109
  %v940 = vpop.permute.xlu0 %939
  %941 = vrot.lane.b32.xlu0 %v778, 109
  %v942 = vpop.permute.xlu0 %941
  %943 = vrot.lane.b32.xlu0 %v779, 109
  %v944 = vpop.permute.xlu0 %943
  %945 = vrot.lane.b32.xlu0 %v780, 109
  %v946 = vpop.permute.xlu0 %945
  %947 = vrot.lane.b32.xlu0 %v781, 109
  %v948 = vpop.permute.xlu0 %947
  %949 = vrot.lane.b32.xlu0 %v783, 109
  %v950 = vpop.permute.xlu0 %949
  %951 = vrot.lane.b32.xlu0 %v784, 109
  %v952 = vpop.permute.xlu0 %951
  %953 = vrot.lane.b32.xlu0 %v785, 109
  %v954 = vpop.permute.xlu0 %953
  %955 = vrot.lane.b32.xlu0 %v786, 109
  %v956 = vpop.permute.xlu0 %955
  %957 = vrot.lane.b32.xlu0 %v787, 109
  %v958 = vpop.permute.xlu0 %957
  %959 = vrot.lane.b32.xlu0 %v788, 109
  %v960 = vpop.permute.xlu0 %959
  %v961 = vsel %vm119, %v938, %v940
  %v962 = vsel %vm119, %v940, %v942
  %v963 = vsel %vm119, %v942, %v944
  %v964 = vsel %vm119, %v944, %v946
  %v965 = vsel %vm119, %v946, %v948
  %v966 = vsel %vm119, %v950, %v952
  %v967 = vsel %vm119, %v952, %v954
  %v968 = vsel %vm119, %v954, %v956
  %v969 = vsel %vm119, %v956, %v958
  %v970 = vsel %vm119, %v958, %v960
  %985 = vrot.lane.b32.xlu0 %v789, 108
  %v986 = vpop.permute.xlu0 %985
  %987 = vrot.lane.b32.xlu0 %v790, 108
  %v988 = vpop.permute.xlu0 %987
  %989 = vrot.lane.b32.xlu0 %v791, 108
  %v990 = vpop.permute.xlu0 %989
  %991 = vrot.lane.b32.xlu0 %v792, 108
  %v992 = vpop.permute.xlu0 %991
  %993 = vrot.lane.b32.xlu0 %v793, 108
  %v994 = vpop.permute.xlu0 %993
  %995 = vrot.lane.b32.xlu0 %v794, 108
  %v996 = vpop.permute.xlu0 %995
  %997 = vrot.lane.b32.xlu0 %v795, 108
  %v998 = vpop.permute.xlu0 %997
  %999 = vrot.lane.b32.xlu0 %v796, 108
  %v1000 = vpop.permute.xlu0 %999
  %1001 = vrot.lane.b32.xlu0 %v797, 108
  %v1002 = vpop.permute.xlu0 %1001
  %1003 = vrot.lane.b32.xlu0 %v798, 108
  %v1004 = vpop.permute.xlu0 %1003
  %1005 = vrot.lane.b32.xlu0 %v799, 108
  %v1006 = vpop.permute.xlu0 %1005
  %1007 = vrot.lane.b32.xlu0 %v800, 108
  %v1008 = vpop.permute.xlu0 %1007
  %1009 = vrot.lane.b32.xlu0 %v801, 108
  %v1010 = vpop.permute.xlu0 %1009
  %1011 = vrot.lane.b32.xlu0 %v802, 108
  %v1012 = vpop.permute.xlu0 %1011
  %v1013 = vsel %vm146, %v986, %v988
  %v1014 = vsel %vm146, %v988, %v990
  %v1015 = vsel %vm146, %v990, %v992
  %v1016 = vsel %vm146, %v992, %v994
  %v1017 = vsel %vm146, %v994, %v996
  %v1018 = vsel %vm146, %v996, %v998
  %v1019 = vsel %vm146, %v1000, %v1002
  %v1020 = vsel %vm146, %v1002, %v1004
  %v1021 = vsel %vm146, %v1004, %v1006
  %v1022 = vsel %vm146, %v1006, %v1008
  %v1023 = vsel %vm146, %v1008, %v1010
  %v1024 = vsel %vm146, %v1010, %v1012
  %1025 = vrot.lane.b32.xlu0 %v789, 92
  %v1026 = vpop.permute.xlu0 %1025
  %1027 = vrot.lane.b32.xlu0 %v790, 92
  %v1028 = vpop.permute.xlu0 %1027
  %1029 = vrot.lane.b32.xlu0 %v791, 92
  %v1030 = vpop.permute.xlu0 %1029
  %1031 = vrot.lane.b32.xlu0 %v792, 92
  %v1032 = vpop.permute.xlu0 %1031
  %1033 = vrot.lane.b32.xlu0 %v793, 92
  %v1034 = vpop.permute.xlu0 %1033
  %1035 = vrot.lane.b32.xlu0 %v794, 92
  %v1036 = vpop.permute.xlu0 %1035
  %1037 = vrot.lane.b32.xlu0 %v795, 92
  %v1038 = vpop.permute.xlu0 %1037
  %1039 = vrot.lane.b32.xlu0 %v796, 92
  %v1040 = vpop.permute.xlu0 %1039
  %1041 = vrot.lane.b32.xlu0 %v797, 92
  %v1042 = vpop.permute.xlu0 %1041
  %1043 = vrot.lane.b32.xlu0 %v798, 92
  %v1044 = vpop.permute.xlu0 %1043
  %1045 = vrot.lane.b32.xlu0 %v799, 92
  %v1046 = vpop.permute.xlu0 %1045
  %1047 = vrot.lane.b32.xlu0 %v800, 92
  %v1048 = vpop.permute.xlu0 %1047
  %1049 = vrot.lane.b32.xlu0 %v801, 92
  %v1050 = vpop.permute.xlu0 %1049
  %1051 = vrot.lane.b32.xlu0 %v802, 92
  %v1052 = vpop.permute.xlu0 %1051
  %v1053 = vsel %vm167, %v1026, %v1028
  %v1054 = vsel %vm167, %v1028, %v1030
  %v1055 = vsel %vm167, %v1030, %v1032
  %v1056 = vsel %vm167, %v1032, %v1034
  %v1057 = vsel %vm167, %v1034, %v1036
  %v1058 = vsel %vm167, %v1036, %v1038
  %v1059 = vsel %vm167, %v1040, %v1042
  %v1060 = vsel %vm167, %v1042, %v1044
  %v1061 = vsel %vm167, %v1044, %v1046
  %v1062 = vsel %vm167, %v1046, %v1048
  %v1063 = vsel %vm167, %v1048, %v1050
  %v1064 = vsel %vm167, %v1050, %v1052
  %1065 = vrot.lane.b32.xlu0 %v789, 91
  %v1066 = vpop.permute.xlu0 %1065
  %1067 = vrot.lane.b32.xlu0 %v790, 91
  %v1068 = vpop.permute.xlu0 %1067
  %1069 = vrot.lane.b32.xlu0 %v791, 91
  %v1070 = vpop.permute.xlu0 %1069
  %1071 = vrot.lane.b32.xlu0 %v792, 91
  %v1072 = vpop.permute.xlu0 %1071
  %1073 = vrot.lane.b32.xlu0 %v793, 91
  %v1074 = vpop.permute.xlu0 %1073
  %1075 = vrot.lane.b32.xlu0 %v794, 91
  %v1076 = vpop.permute.xlu0 %1075
  %1077 = vrot.lane.b32.xlu0 %v795, 91
  %v1078 = vpop.permute.xlu0 %1077
  %1079 = vrot.lane.b32.xlu0 %v796, 91
  %v1080 = vpop.permute.xlu0 %1079
  %1081 = vrot.lane.b32.xlu0 %v797, 91
  %v1082 = vpop.permute.xlu0 %1081
  %1083 = vrot.lane.b32.xlu0 %v798, 91
  %v1084 = vpop.permute.xlu0 %1083
  %1085 = vrot.lane.b32.xlu0 %v799, 91
  %v1086 = vpop.permute.xlu0 %1085
  %1087 = vrot.lane.b32.xlu0 %v800, 91
  %v1088 = vpop.permute.xlu0 %1087
  %1089 = vrot.lane.b32.xlu0 %v801, 91
  %v1090 = vpop.permute.xlu0 %1089
  %1091 = vrot.lane.b32.xlu0 %v802, 91
  %v1092 = vpop.permute.xlu0 %1091
  %v1093 = vsel %vm188, %v1066, %v1068
  %v1094 = vsel %vm188, %v1068, %v1070
  %v1095 = vsel %vm188, %v1070, %v1072
  %v1096 = vsel %vm188, %v1072, %v1074
  %v1097 = vsel %vm188, %v1074, %v1076
  %v1098 = vsel %vm188, %v1076, %v1078
  %v1099 = vsel %vm188, %v1080, %v1082
  %v1100 = vsel %vm188, %v1082, %v1084
  %v1101 = vsel %vm188, %v1084, %v1086
  %v1102 = vsel %vm188, %v1086, %v1088
  %v1103 = vsel %vm188, %v1088, %v1090
  %v1104 = vsel %vm188, %v1090, %v1092
  %1105 = vrot.lane.b32.xlu0 %v789, 90
  %v1106 = vpop.permute.xlu0 %1105
  %1107 = vrot.lane.b32.xlu0 %v790, 90
  %v1108 = vpop.permute.xlu0 %1107
  %1109 = vrot.lane.b32.xlu0 %v791, 90
  %v1110 = vpop.permute.xlu0 %1109
  %1111 = vrot.lane.b32.xlu0 %v792, 90
  %v1112 = vpop.permute.xlu0 %1111
  %1113 = vrot.lane.b32.xlu0 %v793, 90
  %v1114 = vpop.permute.xlu0 %1113
  %1115 = vrot.lane.b32.xlu0 %v794, 90
  %v1116 = vpop.permute.xlu0 %1115
  %1117 = vrot.lane.b32.xlu0 %v795, 90
  %v1118 = vpop.permute.xlu0 %1117
  %1119 = vrot.lane.b32.xlu0 %v796, 90
  %v1120 = vpop.permute.xlu0 %1119
  %1121 = vrot.lane.b32.xlu0 %v797, 90
  %v1122 = vpop.permute.xlu0 %1121
  %1123 = vrot.lane.b32.xlu0 %v798, 90
  %v1124 = vpop.permute.xlu0 %1123
  %1125 = vrot.lane.b32.xlu0 %v799, 90
  %v1126 = vpop.permute.xlu0 %1125
  %1127 = vrot.lane.b32.xlu0 %v800, 90
  %v1128 = vpop.permute.xlu0 %1127
  %1129 = vrot.lane.b32.xlu0 %v801, 90
  %v1130 = vpop.permute.xlu0 %1129
  %1131 = vrot.lane.b32.xlu0 %v802, 90
  %v1132 = vpop.permute.xlu0 %1131
  %v1133 = vsel %vm209, %v1106, %v1108
  %v1134 = vsel %vm209, %v1108, %v1110
  %v1135 = vsel %vm209, %v1110, %v1112
  %v1136 = vsel %vm209, %v1112, %v1114
  %v1137 = vsel %vm209, %v1114, %v1116
  %v1138 = vsel %vm209, %v1116, %v1118
  %v1139 = vsel %vm209, %v1120, %v1122
  %v1140 = vsel %vm209, %v1122, %v1124
  %v1141 = vsel %vm209, %v1124, %v1126
  %v1142 = vsel %vm209, %v1126, %v1128
  %v1143 = vsel %vm209, %v1128, %v1130
  %v1144 = vsel %vm209, %v1130, %v1132
  %v1145 = vld [vmem:[%s3] sm:$0xff]
  %v1146 = vld [vmem:[%s3 + $0x8] sm:$0xff]
  %v1147 = vld [vmem:[%s4] sm:$0xff]
  %1149 = vset.pattern.permute.xlu0 0
  %1150 = vperm.xlu0 %1149, %v1147
  %v1151 = vpop.permute.xlu0 %1150
  %1153 = vrot.lane.b32.xlu0 %v775, 19
  %v1154 = vpop.permute.xlu0 %1153
  %1155 = vrot.lane.b32.xlu0 %v776, 19
  %v1156 = vpop.permute.xlu0 %1155
  %1157 = vrot.lane.b32.xlu0 %v777, 19
  %v1158 = vpop.permute.xlu0 %1157
  %1159 = vrot.lane.b32.xlu0 %v778, 19
  %v1160 = vpop.permute.xlu0 %1159
  %1161 = vrot.lane.b32.xlu0 %v779, 19
  %v1162 = vpop.permute.xlu0 %1161
  %1163 = vrot.lane.b32.xlu0 %v780, 19
  %v1164 = vpop.permute.xlu0 %1163
  %1165 = vrot.lane.b32.xlu0 %v781, 19
  %v1166 = vpop.permute.xlu0 %1165
  %1167 = vrot.lane.b32.xlu0 %v782, 19
  %v1168 = vpop.permute.xlu0 %1167
  %1169 = vrot.lane.b32.xlu0 %v783, 19
  %v1170 = vpop.permute.xlu0 %1169
  %1171 = vrot.lane.b32.xlu0 %v784, 19
  %v1172 = vpop.permute.xlu0 %1171
  %1173 = vrot.lane.b32.xlu0 %v785, 19
  %v1174 = vpop.permute.xlu0 %1173
  %1175 = vrot.lane.b32.xlu0 %v786, 19
  %v1176 = vpop.permute.xlu0 %1175
  %1177 = vrot.lane.b32.xlu0 %v787, 19
  %v1178 = vpop.permute.xlu0 %1177
  %1179 = vrot.lane.b32.xlu0 %v788, 19
  %v1180 = vpop.permute.xlu0 %1179
  %1181 = vrot.lane.b32.xlu0 %v845, 19
  %v1182 = vpop.permute.xlu0 %1181
  %1183 = vrot.lane.b32.xlu0 %v846, 19
  %v1184 = vpop.permute.xlu0 %1183
  %1185 = vrot.lane.b32.xlu0 %v847, 19
  %v1186 = vpop.permute.xlu0 %1185
  %1187 = vrot.lane.b32.xlu0 %v848, 19
  %v1188 = vpop.permute.xlu0 %1187
  %1189 = vrot.lane.b32.xlu0 %v849, 19
  %v1190 = vpop.permute.xlu0 %1189
  %1191 = vrot.lane.b32.xlu0 %v850, 19
  %v1192 = vpop.permute.xlu0 %1191
  %1193 = vrot.lane.b32.xlu0 %v830, 19
  %v1194 = vpop.permute.xlu0 %1193
  %1195 = vrot.lane.b32.xlu0 %v851, 19
  %v1196 = vpop.permute.xlu0 %1195
  %1197 = vrot.lane.b32.xlu0 %v852, 19
  %v1198 = vpop.permute.xlu0 %1197
  %1199 = vrot.lane.b32.xlu0 %v853, 19
  %v1200 = vpop.permute.xlu0 %1199
  %1201 = vrot.lane.b32.xlu0 %v854, 19
  %v1202 = vpop.permute.xlu0 %1201
  %1203 = vrot.lane.b32.xlu0 %v855, 19
  %v1204 = vpop.permute.xlu0 %1203
  %1205 = vrot.lane.b32.xlu0 %v856, 19
  %v1206 = vpop.permute.xlu0 %1205
  %1207 = vrot.lane.b32.xlu0 %v844, 19
  %v1208 = vpop.permute.xlu0 %1207
  %1209 = vrot.lane.b32.xlu0 %v885, 19
  %v1210 = vpop.permute.xlu0 %1209
  %1211 = vrot.lane.b32.xlu0 %v886, 19
  %v1212 = vpop.permute.xlu0 %1211
  %1213 = vrot.lane.b32.xlu0 %v887, 19
  %v1214 = vpop.permute.xlu0 %1213
  %1215 = vrot.lane.b32.xlu0 %v888, 19
  %v1216 = vpop.permute.xlu0 %1215
  %1217 = vrot.lane.b32.xlu0 %v889, 19
  %v1218 = vpop.permute.xlu0 %1217
  %1219 = vrot.lane.b32.xlu0 %v890, 19
  %v1220 = vpop.permute.xlu0 %1219
  %1221 = vrot.lane.b32.xlu0 %v870, 19
  %v1222 = vpop.permute.xlu0 %1221
  %1223 = vrot.lane.b32.xlu0 %v891, 19
  %v1224 = vpop.permute.xlu0 %1223
  %1225 = vrot.lane.b32.xlu0 %v892, 19
  %v1226 = vpop.permute.xlu0 %1225
  %1227 = vrot.lane.b32.xlu0 %v893, 19
  %v1228 = vpop.permute.xlu0 %1227
  %1229 = vrot.lane.b32.xlu0 %v894, 19
  %v1230 = vpop.permute.xlu0 %1229
  %1231 = vrot.lane.b32.xlu0 %v895, 19
  %v1232 = vpop.permute.xlu0 %1231
  %1233 = vrot.lane.b32.xlu0 %v896, 19
  %v1234 = vpop.permute.xlu0 %1233
  %1235 = vrot.lane.b32.xlu0 %v884, 19
  %v1236 = vpop.permute.xlu0 %1235
  %1237 = vrot.lane.b32.xlu0 %v925, 19
  %v1238 = vpop.permute.xlu0 %1237
  %1239 = vrot.lane.b32.xlu0 %v926, 19
  %v1240 = vpop.permute.xlu0 %1239
  %1241 = vrot.lane.b32.xlu0 %v927, 19
  %v1242 = vpop.permute.xlu0 %1241
  %1243 = vrot.lane.b32.xlu0 %v928, 19
  %v1244 = vpop.permute.xlu0 %1243
  %1245 = vrot.lane.b32.xlu0 %v929, 19
  %v1246 = vpop.permute.xlu0 %1245
  %1247 = vrot.lane.b32.xlu0 %v930, 19
  %v1248 = vpop.permute.xlu0 %1247
  %1249 = vrot.lane.b32.xlu0 %v910, 19
  %v1250 = vpop.permute.xlu0 %1249
  %1251 = vrot.lane.b32.xlu0 %v931, 19
  %v1252 = vpop.permute.xlu0 %1251
  %1253 = vrot.lane.b32.xlu0 %v932, 19
  %v1254 = vpop.permute.xlu0 %1253
  %1255 = vrot.lane.b32.xlu0 %v933, 19
  %v1256 = vpop.permute.xlu0 %1255
  %1257 = vrot.lane.b32.xlu0 %v934, 19
  %v1258 = vpop.permute.xlu0 %1257
  %1259 = vrot.lane.b32.xlu0 %v935, 19
  %v1260 = vpop.permute.xlu0 %1259
  %1261 = vrot.lane.b32.xlu0 %v936, 19
  %v1262 = vpop.permute.xlu0 %1261
  %1263 = vrot.lane.b32.xlu0 %v924, 19
  %v1264 = vpop.permute.xlu0 %1263
  %1265 = vrot.lane.b32.xlu0 %v938, 19
  %v1266 = vpop.permute.xlu0 %1265
  %1267 = vrot.lane.b32.xlu0 %v961, 19
  %v1268 = vpop.permute.xlu0 %1267
  %1269 = vrot.lane.b32.xlu0 %v962, 19
  %v1270 = vpop.permute.xlu0 %1269
  %1271 = vrot.lane.b32.xlu0 %v963, 19
  %v1272 = vpop.permute.xlu0 %1271
  %1273 = vrot.lane.b32.xlu0 %v964, 19
  %v1274 = vpop.permute.xlu0 %1273
  %1275 = vrot.lane.b32.xlu0 %v965, 19
  %v1276 = vpop.permute.xlu0 %1275
  %1277 = vrot.lane.b32.xlu0 %v948, 19
  %v1278 = vpop.permute.xlu0 %1277
  %1279 = vrot.lane.b32.xlu0 %v950, 19
  %v1280 = vpop.permute.xlu0 %1279
  %1281 = vrot.lane.b32.xlu0 %v966, 19
  %v1282 = vpop.permute.xlu0 %1281
  %1283 = vrot.lane.b32.xlu0 %v967, 19
  %v1284 = vpop.permute.xlu0 %1283
  %1285 = vrot.lane.b32.xlu0 %v968, 19
  %v1286 = vpop.permute.xlu0 %1285
  %1287 = vrot.lane.b32.xlu0 %v969, 19
  %v1288 = vpop.permute.xlu0 %1287
  %1289 = vrot.lane.b32.xlu0 %v970, 19
  %v1290 = vpop.permute.xlu0 %1289
  %1291 = vrot.lane.b32.xlu0 %v960, 19
  %v1292 = vpop.permute.xlu0 %1291
  %1293 = vrot.lane.b32.xlu0 %v986, 19
  %v1294 = vpop.permute.xlu0 %1293
  %1295 = vrot.lane.b32.xlu0 %v1013, 19
  %v1296 = vpop.permute.xlu0 %1295
  %1297 = vrot.lane.b32.xlu0 %v1014, 19
  %v1298 = vpop.permute.xlu0 %1297
  %1299 = vrot.lane.b32.xlu0 %v1015, 19
  %v1300 = vpop.permute.xlu0 %1299
  %1301 = vrot.lane.b32.xlu0 %v1016, 19
  %v1302 = vpop.permute.xlu0 %1301
  %1303 = vrot.lane.b32.xlu0 %v1017, 19
  %v1304 = vpop.permute.xlu0 %1303
  %1305 = vrot.lane.b32.xlu0 %v1018, 19
  %v1306 = vpop.permute.xlu0 %1305
  %1307 = vrot.lane.b32.xlu0 %v1000, 19
  %v1308 = vpop.permute.xlu0 %1307
  %1309 = vrot.lane.b32.xlu0 %v1019, 19
  %v1310 = vpop.permute.xlu0 %1309
  %1311 = vrot.lane.b32.xlu0 %v1020, 19
  %v1312 = vpop.permute.xlu0 %1311
  %1313 = vrot.lane.b32.xlu0 %v1021, 19
  %v1314 = vpop.permute.xlu0 %1313
  %1315 = vrot.lane.b32.xlu0 %v1022, 19
  %v1316 = vpop.permute.xlu0 %1315
  %1317 = vrot.lane.b32.xlu0 %v1023, 19
  %v1318 = vpop.permute.xlu0 %1317
  %1319 = vrot.lane.b32.xlu0 %v1024, 19
  %v1320 = vpop.permute.xlu0 %1319
  %1321 = vrot.lane.b32.xlu0 %v1026, 19
  %v1322 = vpop.permute.xlu0 %1321
  %1323 = vrot.lane.b32.xlu0 %v1053, 19
  %v1324 = vpop.permute.xlu0 %1323
  %1325 = vrot.lane.b32.xlu0 %v1054, 19
  %v1326 = vpop.permute.xlu0 %1325
  %1327 = vrot.lane.b32.xlu0 %v1055, 19
  %v1328 = vpop.permute.xlu0 %1327
  %1329 = vrot.lane.b32.xlu0 %v1056, 19
  %v1330 = vpop.permute.xlu0 %1329
  %1331 = vrot.lane.b32.xlu0 %v1057, 19
  %v1332 = vpop.permute.xlu0 %1331
  %1333 = vrot.lane.b32.xlu0 %v1058, 19
  %v1334 = vpop.permute.xlu0 %1333
  %1335 = vrot.lane.b32.xlu0 %v1040, 19
  %v1336 = vpop.permute.xlu0 %1335
  %1337 = vrot.lane.b32.xlu0 %v1059, 19
  %v1338 = vpop.permute.xlu0 %1337
  %1339 = vrot.lane.b32.xlu0 %v1060, 19
  %v1340 = vpop.permute.xlu0 %1339
  %1341 = vrot.lane.b32.xlu0 %v1061, 19
  %v1342 = vpop.permute.xlu0 %1341
  %1343 = vrot.lane.b32.xlu0 %v1062, 19
  %v1344 = vpop.permute.xlu0 %1343
  %1345 = vrot.lane.b32.xlu0 %v1063, 19
  %v1346 = vpop.permute.xlu0 %1345
  %1347 = vrot.lane.b32.xlu0 %v1064, 19
  %v1348 = vpop.permute.xlu0 %1347
  %1349 = vrot.lane.b32.xlu0 %v1066, 19
  %v1350 = vpop.permute.xlu0 %1349
  %1351 = vrot.lane.b32.xlu0 %v1093, 19
  %v1352 = vpop.permute.xlu0 %1351
  %1353 = vrot.lane.b32.xlu0 %v1094, 19
  %v1354 = vpop.permute.xlu0 %1353
  %1355 = vrot.lane.b32.xlu0 %v1095, 19
  %v1356 = vpop.permute.xlu0 %1355
  %1357 = vrot.lane.b32.xlu0 %v1096, 19
  %v1358 = vpop.permute.xlu0 %1357
  %1359 = vrot.lane.b32.xlu0 %v1097, 19
  %v1360 = vpop.permute.xlu0 %1359
  %1361 = vrot.lane.b32.xlu0 %v1098, 19
  %v1362 = vpop.permute.xlu0 %1361
  %1363 = vrot.lane.b32.xlu0 %v1080, 19
  %v1364 = vpop.permute.xlu0 %1363
  %1365 = vrot.lane.b32.xlu0 %v1099, 19
  %v1366 = vpop.permute.xlu0 %1365
  %1367 = vrot.lane.b32.xlu0 %v1100, 19
  %v1368 = vpop.permute.xlu0 %1367
  %1369 = vrot.lane.b32.xlu0 %v1101, 19
  %v1370 = vpop.permute.xlu0 %1369
  %1371 = vrot.lane.b32.xlu0 %v1102, 19
  %v1372 = vpop.permute.xlu0 %1371
  %1373 = vrot.lane.b32.xlu0 %v1103, 19
  %v1374 = vpop.permute.xlu0 %1373
  %1375 = vrot.lane.b32.xlu0 %v1104, 19
  %v1376 = vpop.permute.xlu0 %1375
  %1377 = vrot.lane.b32.xlu0 %v1106, 19
  %v1378 = vpop.permute.xlu0 %1377
  %1379 = vrot.lane.b32.xlu0 %v1133, 19
  %v1380 = vpop.permute.xlu0 %1379
  %1381 = vrot.lane.b32.xlu0 %v1134, 19
  %v1382 = vpop.permute.xlu0 %1381
  %1383 = vrot.lane.b32.xlu0 %v1135, 19
  %v1384 = vpop.permute.xlu0 %1383
  %1385 = vrot.lane.b32.xlu0 %v1136, 19
  %v1386 = vpop.permute.xlu0 %1385
  %1387 = vrot.lane.b32.xlu0 %v1137, 19
  %v1388 = vpop.permute.xlu0 %1387
  %1389 = vrot.lane.b32.xlu0 %v1138, 19
  %v1390 = vpop.permute.xlu0 %1389
  %1391 = vrot.lane.b32.xlu0 %v1120, 19
  %v1392 = vpop.permute.xlu0 %1391
  %1393 = vrot.lane.b32.xlu0 %v1139, 19
  %v1394 = vpop.permute.xlu0 %1393
  %1395 = vrot.lane.b32.xlu0 %v1140, 19
  %v1396 = vpop.permute.xlu0 %1395
  %1397 = vrot.lane.b32.xlu0 %v1141, 19
  %v1398 = vpop.permute.xlu0 %1397
  %1399 = vrot.lane.b32.xlu0 %v1142, 19
  %v1400 = vpop.permute.xlu0 %1399
  %1401 = vrot.lane.b32.xlu0 %v1143, 19
  %v1402 = vpop.permute.xlu0 %1401
  %1403 = vrot.lane.b32.xlu0 %v1144, 19
  %v1404 = vpop.permute.xlu0 %1403
  %v1405 = vsel %vm356, %v1154, %v1156
  %v1406 = vsel %vm356, %v1156, %v1158
  %v1407 = vsel %vm356, %v1158, %v1160
  %v1408 = vsel %vm356, %v1160, %v1162
  %v1409 = vsel %vm356, %v1162, %v1164
  %v1410 = vsel %vm356, %v1164, %v1166
  %v1411 = vsel %vm356, %v1168, %v1170
  %v1412 = vsel %vm356, %v1170, %v1172
  %v1413 = vsel %vm356, %v1172, %v1174
  %v1414 = vsel %vm356, %v1174, %v1176
  %v1415 = vsel %vm356, %v1176, %v1178
  %v1416 = vsel %vm356, %v1178, %v1180
  %v1417 = vsel %vm356, %v1182, %v1184
  %v1418 = vsel %vm356, %v1184, %v1186
  %v1419 = vsel %vm356, %v1186, %v1188
  %v1420 = vsel %vm356, %v1188, %v1190
  %v1421 = vsel %vm356, %v1190, %v1192
  %v1422 = vsel %vm356, %v1192, %v1194
  %v1423 = vsel %vm356, %v1196, %v1198
  %v1424 = vsel %vm356, %v1198, %v1200
  %v1425 = vsel %vm356, %v1200, %v1202
  %v1426 = vsel %vm356, %v1202, %v1204
  %v1427 = vsel %vm356, %v1204, %v1206
  %v1428 = vsel %vm356, %v1206, %v1208
  %v1429 = vsel %vm356, %v1210, %v1212
  %v1430 = vsel %vm356, %v1212, %v1214
  %v1431 = vsel %vm356, %v1214, %v1216
  %v1432 = vsel %vm356, %v1216, %v1218
  %v1433 = vsel %vm356, %v1218, %v1220
  %v1434 = vsel %vm356, %v1220, %v1222
  %v1435 = vsel %vm356, %v1224, %v1226
  %v1436 = vsel %vm356, %v1226, %v1228
  %v1437 = vsel %vm356, %v1228, %v1230
  %v1438 = vsel %vm356, %v1230, %v1232
  %v1439 = vsel %vm356, %v1232, %v1234
  %v1440 = vsel %vm356, %v1234, %v1236
  %v1441 = vsel %vm356, %v1238, %v1240
  %v1442 = vsel %vm356, %v1240, %v1242
  %v1443 = vsel %vm356, %v1242, %v1244
  %v1444 = vsel %vm356, %v1244, %v1246
  %v1445 = vsel %vm356, %v1246, %v1248
  %v1446 = vsel %vm356, %v1248, %v1250
  %v1447 = vsel %vm356, %v1252, %v1254
  %v1448 = vsel %vm356, %v1254, %v1256
  %v1449 = vsel %vm356, %v1256, %v1258
  %v1450 = vsel %vm356, %v1258, %v1260
  %v1451 = vsel %vm356, %v1260, %v1262
  %v1452 = vsel %vm356, %v1262, %v1264
  %v1453 = vsel %vm356, %v1266, %v1268
  %v1454 = vsel %vm356, %v1268, %v1270
  %v1455 = vsel %vm356, %v1270, %v1272
  %v1456 = vsel %vm356, %v1272, %v1274
  %v1457 = vsel %vm356, %v1274, %v1276
  %v1458 = vsel %vm356, %v1276, %v1278
  %v1459 = vsel %vm356, %v1280, %v1282
  %v1460 = vsel %vm356, %v1282, %v1284
  %v1461 = vsel %vm356, %v1284, %v1286
  %v1462 = vsel %vm356, %v1286, %v1288
  %v1463 = vsel %vm356, %v1288, %v1290
  %v1464 = vsel %vm356, %v1290, %v1292
  %v1465 = vsel %vm356, %v1294, %v1296
  %v1466 = vsel %vm356, %v1296, %v1298
  %v1467 = vsel %vm356, %v1298, %v1300
  %v1468 = vsel %vm356, %v1300, %v1302
  %v1469 = vsel %vm356, %v1302, %v1304
  %v1470 = vsel %vm356, %v1304, %v1306
  %v1471 = vsel %vm356, %v1308, %v1310
  %v1472 = vsel %vm356, %v1310, %v1312
  %v1473 = vsel %vm356, %v1312, %v1314
  %v1474 = vsel %vm356, %v1314, %v1316
  %v1475 = vsel %vm356, %v1316, %v1318
  %v1476 = vsel %vm356, %v1318, %v1320
  %v1477 = vsel %vm356, %v1322, %v1324
  %v1478 = vsel %vm356, %v1324, %v1326
  %v1479 = vsel %vm356, %v1326, %v1328
  %v1480 = vsel %vm356, %v1328, %v1330
  %v1481 = vsel %vm356, %v1330, %v1332
  %v1482 = vsel %vm356, %v1332, %v1334
  %v1483 = vsel %vm356, %v1336, %v1338
  %v1484 = vsel %vm356, %v1338, %v1340
  %v1485 = vsel %vm356, %v1340, %v1342
  %v1486 = vsel %vm356, %v1342, %v1344
  %v1487 = vsel %vm356, %v1344, %v1346
  %v1488 = vsel %vm356, %v1346, %v1348
  %v1489 = vsel %vm356, %v1350, %v1352
  %v1490 = vsel %vm356, %v1352, %v1354
  %v1491 = vsel %vm356, %v1354, %v1356
  %v1492 = vsel %vm356, %v1356, %v1358
  %v1493 = vsel %vm356, %v1358, %v1360
  %v1494 = vsel %vm356, %v1360, %v1362
  %v1495 = vsel %vm356, %v1364, %v1366
  %v1496 = vsel %vm356, %v1366, %v1368
  %v1497 = vsel %vm356, %v1368, %v1370
  %v1498 = vsel %vm356, %v1370, %v1372
  %v1499 = vsel %vm356, %v1372, %v1374
  %v1500 = vsel %vm356, %v1374, %v1376
  %v1501 = vsel %vm356, %v1378, %v1380
  %v1502 = vsel %vm356, %v1380, %v1382
  %v1503 = vsel %vm356, %v1382, %v1384
  %v1504 = vsel %vm356, %v1384, %v1386
  %v1505 = vsel %vm356, %v1386, %v1388
  %v1506 = vsel %vm356, %v1388, %v1390
  %v1507 = vsel %vm356, %v1392, %v1394
  %v1508 = vsel %vm356, %v1394, %v1396
  %v1509 = vsel %vm356, %v1396, %v1398
  %v1510 = vsel %vm356, %v1398, %v1400
  %v1511 = vsel %vm356, %v1400, %v1402
  %v1512 = vsel %vm356, %v1402, %v1404
  %vm1621 = vcmask 130048
  %v1623 = vsel %vm1621, %v1146, 0
  %1625 = vmatprep.subr.mxu0 %v1496
  %1626 = vmatpush1.msra.mxu0 %v1495
  %1627 = vmatprep.subr.mxu0 %v1490
  %1628 = vmatpush1.msra.mxu0 %v1489
  %1629 = vmatprep.subr.mxu0 %v1484
  %1630 = vmatpush1.msra.mxu0 %v1483
  %1631 = vmatprep.subr.mxu0 %v1478
  %1632 = vmatpush1.msra.mxu0 %v1477
  %1633 = vmatprep.subr.mxu0 %v1472
  %1634 = vmatpush1.msra.mxu0 %v1471
  %1635 = vmatprep.subr.mxu0 %v1466
  %1636 = vmatpush1.msra.mxu0 %v1465
  %1637 = vmatprep.subr.mxu0 %v1460
  %1638 = vmatpush1.msra.mxu0 %v1459
  %1639 = vmatprep.subr.mxu0 %v1454
  %1640 = vmatpush1.msra.mxu0 %v1453
  %1641 = vmatprep.subr.mxu0 %v1448
  %1642 = vmatpush1.msra.mxu0 %v1447
  %1643 = vmatprep.subr.mxu0 %v1442
  %1644 = vmatpush1.msra.mxu0 %v1441
  %1645 = vmatprep.subr.mxu0 %v1436
  %1646 = vmatpush1.msra.mxu0 %v1435
  %1647 = vmatprep.subr.mxu0 %v1430
  %1648 = vmatpush1.msra.mxu0 %v1429
  %1649 = vmatprep.subr.mxu0 %v1424
  %1650 = vmatpush1.msra.mxu0 %v1423
  %1651 = vmatprep.subr.mxu0 %v1418
  %1652 = vmatpush1.msra.mxu0 %v1417
  %1653 = vmatprep.subr.mxu0 %v1412
  %1654 = vmatpush1.msra.mxu0 %v1411
  %1655 = vmatprep.subr.mxu0 %v1406
  %1656 = vmatpush1.msra.mxu0 %v1405
  %1657 = vmatprep.subr.mxu0 0.0
  %1658 = vmatpush2.msra.mxu0 0.0
  %1659 = vmatprep.subr.mxu0 0.0
  %1660 = vmatpush2.msra.mxu0 0.0
  %1661 = vmatprep.subr.mxu0 0.0
  %1662 = vmatpush2.msra.mxu0 0.0
  %1663 = vmatprep.subr.mxu0 0.0
  %1664 = vmatpush2.msra.mxu0 0.0
  %1665 = vmatprep.subr.mxu0 0.0
  %1666 = vmatpush2.msra.mxu0 0.0
  %1667 = vmatprep.subr.mxu0 0.0
  %1668 = vmatpush2.msra.mxu0 0.0
  %1669 = vmatprep.subr.mxu0 0.0
  %1670 = vmatpush2.msra.mxu0 0.0
  %1671 = vmatprep.subr.mxu0 0.0
  %1672 = vmatpush2.msra.mxu0 0.0
  %1673 = vmatprep.subr.mxu0 0.0
  %1674 = vmatpush2.msra.mxu0 0.0
  %1675 = vmatprep.subr.mxu0 0.0
  %1676 = vmatpush2.msra.mxu0 0.0
  %1677 = vmatprep.subr.mxu0 0.0
  %1678 = vmatpush2.msra.mxu0 0.0
  %1679 = vmatprep.subr.mxu0 0.0
  %1680 = vmatpush2.msra.mxu0 0.0
  %1681 = vmatprep.subr.mxu0 0.0
  %1682 = vmatpush2.msra.mxu0 0.0
  %1683 = vmatprep.subr.mxu0 0.0
  %1684 = vmatpush2.msra.mxu0 0.0
  %1685 = vmatprep.subr.mxu0 %v1508
  %1686 = vmatpush2.msra.mxu0 %v1507
  %1687 = vmatprep.subr.mxu0 %v1502
  %1688 = vmatpush2.msra.mxu0 %v1501
  %1689 = vmatprep.mubr.f32.mxu0 %v1623
  %1690 = vmatmul.mubr.f32.gmra.mxu0 %v1145
  %v1691 = vpop.f32.mrf.mxu0
  %v1692 = vadd.f32 %v1151, %v1691
  %v1693 = vpop.f32.mrf.mxu0
  %v1694 = vadd.f32 %v1151, %v1693
  %1695 = vdwg.mxu0
  %1696 = vmatprep.subr.mxu0 %v1498
  %1697 = vmatpush1.msra.mxu0 %v1497
  %1698 = vmatprep.subr.mxu0 %v1492
  %1699 = vmatpush1.msra.mxu0 %v1491
  %1700 = vmatprep.subr.mxu0 %v1486
  %1701 = vmatpush1.msra.mxu0 %v1485
  %1702 = vmatprep.subr.mxu0 %v1480
  %1703 = vmatpush1.msra.mxu0 %v1479
  %1704 = vmatprep.subr.mxu0 %v1474
  %1705 = vmatpush1.msra.mxu0 %v1473
  %1706 = vmatprep.subr.mxu0 %v1468
  %1707 = vmatpush1.msra.mxu0 %v1467
  %1708 = vmatprep.subr.mxu0 %v1462
  %1709 = vmatpush1.msra.mxu0 %v1461
  %1710 = vmatprep.subr.mxu0 %v1456
  %1711 = vmatpush1.msra.mxu0 %v1455
  %1712 = vmatprep.subr.mxu0 %v1450
  %1713 = vmatpush1.msra.mxu0 %v1449
  %1714 = vmatprep.subr.mxu0 %v1444
  %1715 = vmatpush1.msra.mxu0 %v1443
  %1716 = vmatprep.subr.mxu0 %v1438
  %1717 = vmatpush1.msra.mxu0 %v1437
  %1718 = vmatprep.subr.mxu0 %v1432
  %1719 = vmatpush1.msra.mxu0 %v1431
  %1720 = vmatprep.subr.mxu0 %v1426
  %1721 = vmatpush1.msra.mxu0 %v1425
  %1722 = vmatprep.subr.mxu0 %v1420
  %1723 = vmatpush1.msra.mxu0 %v1419
  %1724 = vmatprep.subr.mxu0 %v1414
  %1725 = vmatpush1.msra.mxu0 %v1413
  %1726 = vmatprep.subr.mxu0 %v1408
  %1727 = vmatpush1.msra.mxu0 %v1407
  %1728 = vmatprep.subr.mxu0 0.0
  %1729 = vmatpush2.msra.mxu0 0.0
  %1730 = vmatprep.subr.mxu0 0.0
  %1731 = vmatpush2.msra.mxu0 0.0
  %1732 = vmatprep.subr.mxu0 0.0
  %1733 = vmatpush2.msra.mxu0 0.0
  %1734 = vmatprep.subr.mxu0 0.0
  %1735 = vmatpush2.msra.mxu0 0.0
  %1736 = vmatprep.subr.mxu0 0.0
  %1737 = vmatpush2.msra.mxu0 0.0
  %1738 = vmatprep.subr.mxu0 0.0
  %1739 = vmatpush2.msra.mxu0 0.0
  %1740 = vmatprep.subr.mxu0 0.0
  %1741 = vmatpush2.msra.mxu0 0.0
  %1742 = vmatprep.subr.mxu0 0.0
  %1743 = vmatpush2.msra.mxu0 0.0
  %1744 = vmatprep.subr.mxu0 0.0
  %1745 = vmatpush2.msra.mxu0 0.0
  %1746 = vmatprep.subr.mxu0 0.0
  %1747 = vmatpush2.msra.mxu0 0.0
  %1748 = vmatprep.subr.mxu0 0.0
  %1749 = vmatpush2.msra.mxu0 0.0
  %1750 = vmatprep.subr.mxu0 0.0
  %1751 = vmatpush2.msra.mxu0 0.0
  %1752 = vmatprep.subr.mxu0 0.0
  %1753 = vmatpush2.msra.mxu0 0.0
  %1754 = vmatprep.subr.mxu0 0.0
  %1755 = vmatpush2.msra.mxu0 0.0
  %1756 = vmatprep.subr.mxu0 %v1510
  %1757 = vmatpush2.msra.mxu0 %v1509
  %1758 = vmatprep.subr.mxu0 %v1504
  %1759 = vmatpush2.msra.mxu0 %v1503
  %1760 = vmatprep.mubr.f32.mxu0 %v1623
  %1761 = vmatmul.mubr.f32.gmra.mxu0 %v1145
  %v1762 = vpop.f32.mrf.mxu0
  %v1763 = vadd.f32 %v1151, %v1762
  %v1764 = vpop.f32.mrf.mxu0
  %v1765 = vadd.f32 %v1151, %v1764
  %1766 = vdwg.mxu0
  %1767 = vmatprep.subr.mxu0 %v1500
  %1768 = vmatpush1.msra.mxu0 %v1499
  %1769 = vmatprep.subr.mxu0 %v1494
  %1770 = vmatpush1.msra.mxu0 %v1493
  %1771 = vmatprep.subr.mxu0 %v1488
  %1772 = vmatpush1.msra.mxu0 %v1487
  %1773 = vmatprep.subr.mxu0 %v1482
  %1774 = vmatpush1.msra.mxu0 %v1481
  %1775 = vmatprep.subr.mxu0 %v1476
  %1776 = vmatpush1.msra.mxu0 %v1475
  %1777 = vmatprep.subr.mxu0 %v1470
  %1778 = vmatpush1.msra.mxu0 %v1469
  %1779 = vmatprep.subr.mxu0 %v1464
  %1780 = vmatpush1.msra.mxu0 %v1463
  %1781 = vmatprep.subr.mxu0 %v1458
  %1782 = vmatpush1.msra.mxu0 %v1457
  %1783 = vmatprep.subr.mxu0 %v1452
  %1784 = vmatpush1.msra.mxu0 %v1451
  %1785 = vmatprep.subr.mxu0 %v1446
  %1786 = vmatpush1.msra.mxu0 %v1445
  %1787 = vmatprep.subr.mxu0 %v1440
  %1788 = vmatpush1.msra.mxu0 %v1439
  %1789 = vmatprep.subr.mxu0 %v1434
  %1790 = vmatpush1.msra.mxu0 %v1433
  %1791 = vmatprep.subr.mxu0 %v1428
  %1792 = vmatpush1.msra.mxu0 %v1427
  %1793 = vmatprep.subr.mxu0 %v1422
  %1794 = vmatpush1.msra.mxu0 %v1421
  %1795 = vmatprep.subr.mxu0 %v1416
  %1796 = vmatpush1.msra.mxu0 %v1415
  %1797 = vmatprep.subr.mxu0 %v1410
  %1798 = vmatpush1.msra.mxu0 %v1409
  %1799 = vmatprep.subr.mxu0 0.0
  %1800 = vmatpush2.msra.mxu0 0.0
  %1801 = vmatprep.subr.mxu0 0.0
  %1802 = vmatpush2.msra.mxu0 0.0
  %1803 = vmatprep.subr.mxu0 0.0
  %1804 = vmatpush2.msra.mxu0 0.0
  %1805 = vmatprep.subr.mxu0 0.0
  %1806 = vmatpush2.msra.mxu0 0.0
  %1807 = vmatprep.subr.mxu0 0.0
  %1808 = vmatpush2.msra.mxu0 0.0
  %1809 = vmatprep.subr.mxu0 0.0
  %1810 = vmatpush2.msra.mxu0 0.0
  %1811 = vmatprep.subr.mxu0 0.0
  %1812 = vmatpush2.msra.mxu0 0.0
  %1813 = vmatprep.subr.mxu0 0.0
  %1814 = vmatpush2.msra.mxu0 0.0
  %1815 = vmatprep.subr.mxu0 0.0
  %1816 = vmatpush2.msra.mxu0 0.0
  %1817 = vmatprep.subr.mxu0 0.0
  %1818 = vmatpush2.msra.mxu0 0.0
  %1819 = vmatprep.subr.mxu0 0.0
  %1820 = vmatpush2.msra.mxu0 0.0
  %1821 = vmatprep.subr.mxu0 0.0
  %1822 = vmatpush2.msra.mxu0 0.0
  %1823 = vmatprep.subr.mxu0 0.0
  %1824 = vmatpush2.msra.mxu0 0.0
  %1825 = vmatprep.subr.mxu0 0.0
  %1826 = vmatpush2.msra.mxu0 0.0
  %1827 = vmatprep.subr.mxu0 %v1512
  %1828 = vmatpush2.msra.mxu0 %v1511
  %1829 = vmatprep.subr.mxu0 %v1506
  %1830 = vmatpush2.msra.mxu0 %v1505
  %1831 = vmatprep.mubr.f32.mxu0 %v1623
  %1832 = vmatmul.mubr.f32.gmra.mxu0 %v1145
  %v1833 = vpop.f32.mrf.mxu0
  %v1834 = vadd.f32 %v1151, %v1833
  %v1835 = vpop.f32.mrf.mxu0
  %v1836 = vadd.f32 %v1151, %v1835
  %1837 = vdwg.mxu0
  %1838 = vst [vmem:[%s6] sm:$0xff] %v1692
  %1839 = vst [vmem:[%s6 + $0x8] sm:$0xff] %v1694
  %1840 = vst [vmem:[%s6 + $0x10] sm:$0xff] %v1763
  %1841 = vst [vmem:[%s6 + $0x18] sm:$0xff] %v1765
  %1842 = vst [vmem:[%s6 + $0x20] sm:$0xff] %v1834
  %1843 = vst [vmem:[%s6 + $0x28] sm:$0xff] %v1836
  // Predicated region
  $region26: #{_kdnet_forward_impl.1} parent=0 // pred_check
    _
  $region27: #{_kdnet_forward_impl.1} parent=0 // pred_check_branch
    %1845 = sbr.rel (0) target = $region29
  $region28: #{_kdnet_forward_impl.1} parent=0 // pred_region
    _
  $region29: #{_kdnet_forward_impl.1} parent=0 // pred_fallthru
    _
  // Predicated region
  $region30: #{_kdnet_forward_impl.1} parent=0 // pred_check
    _
  $region31: #{_kdnet_forward_impl.1} parent=0 // pred_check_branch
    %1847 = sbr.rel (0) target = $region33
  $region32: #{_kdnet_forward_impl.1} parent=0 // pred_region
    _
  $region33: #{_kdnet_forward_impl.1} parent=0 // pred_fallthru
    _

</llo_original>
